<compile_context>
chip_gen: v6e
topology: v6e:2x2x1
jax: 0.10.0
libtpu: 0.0.40
codegen_flags: <defaults>
</compile_context>

<pallas_src>
import jax
import jax.numpy as jnp
import numpy as np
from jax import lax
from jax.experimental import pallas as pl
from jax.experimental.pallas import tpu as pltpu

# ---- scaled-down hyperparameters (consistent with the module's structure) ----
B = 2                          # batch
T = 8                          # block_size / sequence length
E = 32                         # embeddings_dims
NO_OF_HEADS = 8                # ModelArgs.no_of_heads
MQA_HEADS = 2                  # ModelArgs.mqa_heads
G = NO_OF_HEADS // MQA_HEADS   # GQA groups (= MQA modules) = 4
HS = E // G                    # MQA head_size = 8
KV_HEADS = 2                   # MQA.no_of_kv_heads -> #query projections per MQA
NH = G * KV_HEADS              # total query heads = 8
HIDDEN = 2 * E                 # SwiGLU intermediate size = 64
EPS = 1e-6                     # rms_norm_eps

NBT = B * T                    # flattened rows = 16
KOFF = 0                       # packed-QKV column offsets
VOFF = G * HS                  # 32
QOFF = 2 * G * HS              # 64
PACKW = 2 * G * HS + NH * HS   # packed QKV width = 128
SW = NH * T                    # packed score width per batch block = 64
REPK = NH * HS                 # K offset inside the replicated KV tensor = 64
NEG = -1e30                    # additive causal-mask bias


# ------------------------------ helpers ---------------------------------------
def _rmsnorm(x, w, eps=EPS):
    var = jnp.mean(x * x, axis=-1, keepdims=True)
    return x * lax.rsqrt(var + eps) * w


def _rope(v, cos, sin):
    # HF-style rotate_half rope on last dim (reference only).
    h = v.shape[-1] // 2
    rot = jnp.concatenate([-v[:, h:], v[:, :h]], axis=-1)
    return v * cos + rot * sin


# --------------------------------- kernel -------------------------------------
def decoder_layer_kernel(x_ref, cos_ref, sina_ref, sinb_ref, wqkv_ref, rep2_ref,
                         tile_ref, mk_ref, mv_ref, bias_ref, seg_ref, seghs_ref,
                         wattn_ref, wgu_ref, wdown_ref, wnorm_ref, y_ref):
    f32, bf16 = jnp.float32, jnp.bfloat16
    x = x_ref[...]                                   # (T, E) f32 -- one batch element
    wn = wnorm_ref[...]                              # (4, E) -- norm1..norm4 scales

    # ---------------- attention block: x + norm2(GQA(norm1(x))) ----------------
    h1 = _rmsnorm(x, wn[0])
    qkv = jnp.dot(h1.astype(bf16), wqkv_ref[...],
                  preferred_element_type=f32)        # (T, 128) = K|V|Q (1/sqrt(HS) in Q)

    # Fused rotate-half RoPE: half-selection + rotate_half sign are folded into the two
    # sin tables; V columns carry cos=1 / sin=0 (identity).  Rolls are XLU (free slot).
    qkv = (qkv * cos_ref[...]
           + pltpu.roll(qkv, PACKW - HS // 2, 1) * sina_ref[...]
           + pltpu.roll(qkv, HS // 2, 1) * sinb_ref[...])
    qkv16 = qkv.astype(bf16)

    # Runtime block-diagonal K^T / V tensors: one replication matmul + one row-tiling
    # matmul against constant 0/1 matrices, then two constant block-diag masks.
    rep = jnp.dot(qkv16, rep2_ref[...], preferred_element_type=f32)        # (T, 128)
    tiled = jnp.dot(tile_ref[...], rep.astype(bf16),
                    preferred_element_type=f32)                            # (SW, 128)
    kbd = (tiled * mk_ref[...]).astype(bf16)   # K^T blocks in cols 64..127, zero elsewhere
    vbd = (tiled * mv_ref[...]).astype(bf16)   # V   blocks in cols  0..63,  zero elsewhere

    # One lane-dense score matmul for all 8 heads (head h in cols h*T..(h+1)*T).
    # qkv's K|V columns contract against kbd's zeroed left half, so no Q masking needed.
    dn = (((1,), (1,)), ((), ()))              # contract packed columns: qkv @ kbd^T
    s = lax.dot_general(qkv16, kbd, dn, preferred_element_type=f32)        # (T, SW)
    s = s + bias_ref[...]                      # hoisted causal additive bias (0 / -1e30)
    s = s - jnp.max(s, axis=-1, keepdims=True)
    p = jnp.exp(s)
    p16 = p.astype(bf16)
    # attn dropout -> identity (inference)

    # Deferred softmax normalization: per-head segment sums now, scale after PV.
    denom = jnp.dot(p16, seg_ref[...], preferred_element_type=f32)         # (T, NH)
    inv = pl.reciprocal(denom, approx=True)
    invb = jnp.dot(inv.astype(bf16), seghs_ref[...],
                   preferred_element_type=f32)                             # (T, 128)

    pv = jnp.dot(p16, vbd, preferred_element_type=f32)                     # (T, 128); cols<64 valid
    attn = jnp.dot((pv * invb).astype(bf16), wattn_ref[...],
                   preferred_element_type=f32)                             # (T, E) (wo_bd@wgqa folded)
    # GQA dropout -> identity (inference)
    x = x + _rmsnorm(attn, wn[1])

    # ---------------- FFN block: x + norm4(SwiGLU(norm3(x))) --------------------
    h3 = _rmsnorm(x, wn[2])
    gu = jnp.dot(h3.astype(bf16), wgu_ref[...], preferred_element_type=f32)  # (T,128)=gate|up
    sig = pl.reciprocal(1.0 + jnp.exp(-gu), approx=True)                     # sigmoid via EUP
    # roll brings the up half under the gate half; junk right half killed by zero wdown rows
    prod = gu * sig * pltpu.roll(gu, HIDDEN, 1)                              # cols<64: silu(gate)*up
    ffn = jnp.dot(prod.astype(bf16), wdown_ref[...], preferred_element_type=f32)
    # FFN dropout -> identity (inference)
    x = x + _rmsnorm(ffn, wn[3])

    y_ref[...] = x


# ------------------------------- wrapper ---------------------------------------
def decoder_layer(x, cos, sin, wq, wk, wv, wo, wgqa, wgate, wup, wdown, wnorm):
    f32, bf16 = jnp.float32, jnp.bfloat16
    scale = HS ** -0.5

    # ---- packed QKV projection (1/sqrt(HS) folded into Q), bf16 weights ----
    wk_p = jnp.concatenate([wk[g] for g in range(G)], axis=1)              # (E, G*HS)
    wv_p = jnp.concatenate([wv[g] for g in range(G)], axis=1)              # (E, G*HS)
    wq_p = jnp.concatenate([wq[g, h] * scale for g in range(G)
                            for h in range(KV_HEADS)], axis=1)             # (E, NH*HS)
    w_qkv = jnp.concatenate([wk_p, wv_p, wq_p], axis=1).astype(bf16)       # (E, 128)

    # ---- fold per-group output projections and GQA projection into ONE weight ----
    wo_bd = jnp.zeros((NH * HS, G * E), f32)
    for g in range(G):
        wo_bd = wo_bd.at[g * KV_HEADS * HS:(g + 1) * KV_HEADS * HS,
                         g * E:(g + 1) * E].set(wo[g])
    w_attn = jnp.zeros((PACKW, E), f32).at[:NH * HS].set(wo_bd @ wgqa).astype(bf16)

    # ---- SwiGLU weights: gate|up fused; down padded to 128 rows (junk-killing zeros) ----
    w_gu = jnp.concatenate([wgate, wup], axis=1).astype(bf16)              # (E, 128)
    w_down = jnp.zeros((PACKW, E), f32).at[:HIDDEN].set(wdown).astype(bf16)

    # ---- RoPE tables in packed K|V|Q column layout; sign/half-selection folded in ----
    col = jnp.arange(PACKW)
    cmod = col % HS
    is_v = (col >= VOFF) & (col < QOFF)
    first = cmod < (HS // 2)
    cos_all = jnp.where(is_v[None, :], 1.0, cos[:, cmod])                  # (T, 128)
    sin_full = sin[:, cmod]
    sin_a = jnp.where((~is_v & first)[None, :], -sin_full, 0.0)            # pairs roll(-HS/2)
    sin_b = jnp.where((~is_v & ~first)[None, :], sin_full, 0.0)            # pairs roll(+HS/2)

    # ---- constant structural matrices (hoisted out of the kernel) ----
    rep2 = np.zeros((PACKW, PACKW), np.float32)        # qkv cols -> per-head replicated KV
    for h in range(NH):
        g = h // KV_HEADS
        for d in range(HS):
            rep2[VOFF + g * HS + d, h * HS + d] = 1.0          # V -> cols 0..63
            rep2[KOFF + g * HS + d, REPK + h * HS + d] = 1.0   # K -> cols 64..127
    tile = np.zeros((SW, T), np.float32)               # row replication (t of each head row)
    tile[np.arange(SW), np.arange(SW) % T] = 1.0

    r_head = np.arange(SW)[:, None] // T
    c_idx = np.arange(PACKW)[None, :]
    mk = ((c_idx >= REPK) & ((c_idx - REPK) // HS == r_head)).astype(np.float32)
    mv = ((c_idx < REPK) & (c_idx // HS == r_head)).astype(np.float32)

    q_idx = np.arange(T)[:, None]
    k_idx = np.arange(SW)[None, :] % T
    bias = np.where(k_idx <= q_idx, 0.0, NEG).astype(np.float32)           # (T, SW) causal bias

    seg = (np.arange(SW)[:, None] // T == np.arange(NH)[None, :]).astype(np.float32)
    seghs = ((c_idx < REPK) & (c_idx // HS == np.arange(NH)[:, None])).astype(np.float32)

    x2 = x.reshape(NBT, E)
    args = (x2, cos_all, sin_a, sin_b, w_qkv,
            jnp.asarray(rep2, bf16), jnp.asarray(tile, bf16),
            jnp.asarray(mk, f32), jnp.asarray(mv, f32), jnp.asarray(bias, f32),
            jnp.asarray(seg, bf16), jnp.asarray(seghs, bf16),
            w_attn, w_gu, w_down, wnorm)

    def const_spec(a):
        nd = a.ndim
        return pl.BlockSpec(a.shape, lambda b, _nd=nd: (0,) * _nd)   # grid-invariant -> resident

    in_specs = [pl.BlockSpec((T, E), lambda b: (b, 0))] + [const_spec(a) for a in args[1:]]

    # advisory cost estimate for XLA scheduling
    mm = [(T, E, PACKW), (T, PACKW, PACKW), (SW, T, PACKW), (T, PACKW, SW),
          (T, SW, NH), (T, NH, PACKW), (T, SW, PACKW), (T, PACKW, E),
          (T, E, PACKW), (T, PACKW, E)]
    flops = B * sum(2 * m * k * n for m, k, n in mm)
    transc = B * (2 * T * PACKW + T * SW + T * NH)
    bytes_acc = int(sum(int(np.prod(a.shape)) * a.dtype.itemsize for a in args)
                    + NBT * E * 4)

    out = pl.pallas_call(
        decoder_layer_kernel,
        out_shape=jax.ShapeDtypeStruct((NBT, E), f32),
        grid_spec=pltpu.PrefetchScalarGridSpec(
            num_scalar_prefetch=0,
            grid=(B,),                                  # one batch element per grid step
            in_specs=in_specs,
            out_specs=pl.BlockSpec((T, E), lambda b: (b, 0)),
        ),
        compiler_params=pltpu.CompilerParams(
            dimension_semantics=("parallel",),          # megacore sharding on v7x
            vmem_limit_bytes=32 * 1024 * 1024),
        cost_estimate=pl.CostEstimate(flops=flops, transcendentals=transc,
                                      bytes_accessed=bytes_acc),
    )(*args)
    return out.reshape(B, T, E)


# ------------------------- pure-JAX reference (for checking) -------------------
def decoder_layer_ref(x, cos, sin, wq, wk, wv, wo, wgqa, wgate, wup, wdown, wnorm):
    def one(xb):
        causal = jnp.tril(jnp.ones((T, T), dtype=bool))
        h1 = _rmsnorm(xb, wnorm[0])
        groups = []
        for g in range(G):
            k = h1 @ wk[g]
            v = h1 @ wv[g]
            k_rot = _rope(k, cos, sin)
            heads = []
            for h in range(KV_HEADS):
                q_rot = _rope(h1 @ wq[g, h], cos, sin)
                s = (q_rot @ k_rot.T) * (HS ** -0.5)
                s = jnp.where(causal, s, -jnp.inf)
                p = jax.nn.softmax(s, axis=-1)
                heads.append(p @ v)
            groups.append(jnp.concatenate(heads, axis=-1) @ wo[g])
        attn = jnp.concatenate(groups, axis=-1) @ wgqa
        xb = xb + _rmsnorm(attn, wnorm[1])
        h3 = _rmsnorm(xb, wnorm[2])
        ffn = (jax.nn.silu(h3 @ wgate) * (h3 @ wup)) @ wdown
        return xb + _rmsnorm(ffn, wnorm[3])

    return jax.vmap(one)(x)


# --------------------------------- main ----------------------------------------
def _linear_init(key, fan_in, shape):
    bound = 1.0 / np.sqrt(fan_in)
    return jax.random.uniform(key, shape, jnp.float32, -bound, bound)


if __name__ == "__main__":
    root = jax.random.PRNGKey(0)
    keys = jax.random.split(root, 16)

    x = jax.random.normal(keys[0], (B, T, E), jnp.float32)

    # rotary tables: theta = 10000**(-2*d/E) as in the reference, sliced to HS.
    pos = jnp.arange(T, dtype=jnp.float32)[:, None]
    dims = jnp.arange(E, dtype=jnp.float32)[None, :]
    angles = pos * jnp.power(10000.0, -2.0 * dims / E)      # (T, E)
    cos = jnp.cos(angles)[:, :HS]
    sin = jnp.sin(angles)[:, :HS]

    # parameters (stored as (in, out); deterministic init)
    wq = _linear_init(keys[1], E, (G, KV_HEADS, E, HS))      # per-group query projs
    wk = _linear_init(keys[2], E, (G, E, HS))                # per-group key proj
    wv = _linear_init(keys[3], E, (G, E, HS))                # per-group value proj
    wo = _linear_init(keys[4], KV_HEADS * HS, (G, KV_HEADS * HS, E))  # MQA out proj
    wgqa = _linear_init(keys[5], G * E, (G * E, E))          # GQA out proj
    wgate = _linear_init(keys[6], E, (E, HIDDEN))            # SwiGLU gate_proj
    wup = _linear_init(keys[7], E, (E, HIDDEN))              # SwiGLU up_proj
    wdown = _linear_init(keys[8], HIDDEN, (HIDDEN, E))       # SwiGLU down_proj
    wnorm = jnp.ones((4, E), jnp.float32)                    # norm1..norm4 scales

    args = (x, cos, sin, wq, wk, wv, wo, wgqa, wgate, wup, wdown, wnorm)

    out = jax.jit(decoder_layer)(*args)
    out = jax.block_until_ready(out)

    ref = decoder_layer_ref(*args)
    # Tolerance absorbs bf16 matmul-operand rounding (f32 accumulation) and the
    # approx EUP reciprocal used for softmax/sigmoid; the f32 reference is exact math.
    np.testing.assert_allclose(np.asarray(out), np.asarray(ref),
                               rtol=5e-2, atol=5e-2)

    print("KERNEL_OK")
</pallas_src>

<mosaic_0001>
module attributes {stable_mosaic.version = 11 : i64} {
  func.func @decoder_layer_kernel(%arg0: i32, %arg1: memref<8x32xf32, #tpu.memory_space<vmem>>, %arg2: memref<8x128xf32, #tpu.memory_space<vmem>>, %arg3: memref<8x128xf32, #tpu.memory_space<vmem>>, %arg4: memref<8x128xf32, #tpu.memory_space<vmem>>, %arg5: memref<32x128xbf16, #tpu.memory_space<vmem>>, %arg6: memref<128x128xbf16, #tpu.memory_space<vmem>>, %arg7: memref<64x8xbf16, #tpu.memory_space<vmem>>, %arg8: memref<64x128xf32, #tpu.memory_space<vmem>>, %arg9: memref<64x128xf32, #tpu.memory_space<vmem>>, %arg10: memref<8x64xf32, #tpu.memory_space<vmem>>, %arg11: memref<64x8xbf16, #tpu.memory_space<vmem>>, %arg12: memref<8x128xbf16, #tpu.memory_space<vmem>>, %arg13: memref<128x32xbf16, #tpu.memory_space<vmem>>, %arg14: memref<32x128xbf16, #tpu.memory_space<vmem>>, %arg15: memref<128x32xbf16, #tpu.memory_space<vmem>>, %arg16: memref<4x32xf32, #tpu.memory_space<vmem>>, %arg17: memref<8x32xf32, #tpu.memory_space<vmem>>) attributes {dimension_semantics = [#tpu.dimension_semantics<parallel>], iteration_bounds = array<i64: 2>, scalar_prefetch = 0 : i64, scratch_operands = 0 : i64, tpu.core_type = #tpu.core_type<tc>, window_params = [{transform_indices = @transform_0, window_bounds = array<i64: 8, 32>}, {pipeline_mode = #tpu.pipeline_mode<synchronous>, transform_indices = @transform_1, window_bounds = array<i64: 8, 128>}, {pipeline_mode = #tpu.pipeline_mode<synchronous>, transform_indices = @transform_2, window_bounds = array<i64: 8, 128>}, {pipeline_mode = #tpu.pipeline_mode<synchronous>, transform_indices = @transform_3, window_bounds = array<i64: 8, 128>}, {pipeline_mode = #tpu.pipeline_mode<synchronous>, transform_indices = @transform_4, window_bounds = array<i64: 32, 128>}, {pipeline_mode = #tpu.pipeline_mode<synchronous>, transform_indices = @transform_5, window_bounds = array<i64: 128, 128>}, {pipeline_mode = #tpu.pipeline_mode<synchronous>, transform_indices = @transform_6, window_bounds = array<i64: 64, 8>}, {pipeline_mode = #tpu.pipeline_mode<synchronous>, transform_indices = @transform_7, window_bounds = array<i64: 64, 128>}, {pipeline_mode = #tpu.pipeline_mode<synchronous>, transform_indices = @transform_8, window_bounds = array<i64: 64, 128>}, {pipeline_mode = #tpu.pipeline_mode<synchronous>, transform_indices = @transform_9, window_bounds = array<i64: 8, 64>}, {pipeline_mode = #tpu.pipeline_mode<synchronous>, transform_indices = @transform_10, window_bounds = array<i64: 64, 8>}, {pipeline_mode = #tpu.pipeline_mode<synchronous>, transform_indices = @transform_11, window_bounds = array<i64: 8, 128>}, {pipeline_mode = #tpu.pipeline_mode<synchronous>, transform_indices = @transform_12, window_bounds = array<i64: 128, 32>}, {pipeline_mode = #tpu.pipeline_mode<synchronous>, transform_indices = @transform_13, window_bounds = array<i64: 32, 128>}, {pipeline_mode = #tpu.pipeline_mode<synchronous>, transform_indices = @transform_14, window_bounds = array<i64: 128, 32>}, {pipeline_mode = #tpu.pipeline_mode<synchronous>, transform_indices = @transform_15, window_bounds = array<i64: 4, 32>}, {transform_indices = @transform_16, window_bounds = array<i64: 8, 32>}]} {
    %c0 = arith.constant 0 : index
    %c0_0 = arith.constant 0 : index
    %0 = vector.load %arg1[%c0, %c0_0] : memref<8x32xf32, #tpu.memory_space<vmem>>, vector<8x32xf32>
    %c0_1 = arith.constant 0 : index
    %c0_2 = arith.constant 0 : index
    %1 = vector.load %arg16[%c0_1, %c0_2] : memref<4x32xf32, #tpu.memory_space<vmem>>, vector<4x32xf32>
    %2 = vector.extract_strided_slice %1 {offsets = [0, 0], sizes = [1, 32], strides = [1, 1]} : vector<4x32xf32> to vector<1x32xf32>
    %3 = vector.shape_cast %2 : vector<1x32xf32> to vector<32xf32>
    %4 = arith.mulf %0, %0 : vector<8x32xf32>
    %cst = arith.constant dense<0.000000e+00> : vector<8xf32>
    %5 = vector.multi_reduction <add>, %4, %cst [1] : vector<8x32xf32> to vector<8xf32>
    %6 = vector.shape_cast %5 : vector<8xf32> to vector<8x1xf32>
    %cst_3 = arith.constant 3.200000e+01 : f32
    %7 = vector.broadcast %cst_3 : f32 to vector<8x1xf32>
    %8 = arith.divf %6, %7 : vector<8x1xf32>
    %cst_4 = arith.constant 9.99999997E-7 : f32
    %9 = vector.broadcast %cst_4 : f32 to vector<8x1xf32>
    %10 = arith.addf %8, %9 : vector<8x1xf32>
    %11 = math.rsqrt %10 : vector<8x1xf32>
    %12 = vector.broadcast %11 : vector<8x1xf32> to vector<8x32xf32>
    %13 = arith.mulf %0, %12 : vector<8x32xf32>
    %14 = vector.shape_cast %3 : vector<32xf32> to vector<1x32xf32>
    %15 = vector.broadcast %14 : vector<1x32xf32> to vector<8x32xf32>
    %16 = arith.mulf %13, %15 : vector<8x32xf32>
    %17 = arith.truncf %16 : vector<8x32xf32> to vector<8x32xbf16>
    %c0_5 = arith.constant 0 : index
    %c0_6 = arith.constant 0 : index
    %18 = vector.load %arg5[%c0_5, %c0_6] : memref<32x128xbf16, #tpu.memory_space<vmem>>, vector<32x128xbf16>
    %cst_7 = arith.constant dense<0.000000e+00> : vector<8x128xf32>
    %19 = tpu.matmul %17, %18, %cst_7 {dimension_numbers = #tpu.dot_dimension_numbers<[1], [0], [0], [1], [0, 0, 1, 1], [], []>} : vector<8x32xbf16>, vector<32x128xbf16>, vector<8x128xf32> -> vector<8x128xf32>
    %c0_8 = arith.constant 0 : index
    %c0_9 = arith.constant 0 : index
    %20 = vector.load %arg2[%c0_8, %c0_9] : memref<8x128xf32, #tpu.memory_space<vmem>>, vector<8x128xf32>
    %21 = arith.mulf %19, %20 : vector<8x128xf32>
    %c124_i32 = arith.constant 124 : i32
    %22 = tpu.dynamic_rotate %19 by %c124_i32 dim 1 : vector<8x128xf32>, i32 -> vector<8x128xf32>
    %c0_10 = arith.constant 0 : index
    %c0_11 = arith.constant 0 : index
    %23 = vector.load %arg3[%c0_10, %c0_11] : memref<8x128xf32, #tpu.memory_space<vmem>>, vector<8x128xf32>
    %24 = arith.mulf %22, %23 : vector<8x128xf32>
    %25 = arith.addf %21, %24 : vector<8x128xf32>
    %c4_i32 = arith.constant 4 : i32
    %26 = tpu.dynamic_rotate %19 by %c4_i32 dim 1 : vector<8x128xf32>, i32 -> vector<8x128xf32>
    %c0_12 = arith.constant 0 : index
    %c0_13 = arith.constant 0 : index
    %27 = vector.load %arg4[%c0_12, %c0_13] : memref<8x128xf32, #tpu.memory_space<vmem>>, vector<8x128xf32>
    %28 = arith.mulf %26, %27 : vector<8x128xf32>
    %29 = arith.addf %25, %28 : vector<8x128xf32>
    %30 = arith.truncf %29 : vector<8x128xf32> to vector<8x128xbf16>
    %c0_14 = arith.constant 0 : index
    %c0_15 = arith.constant 0 : index
    %31 = vector.load %arg6[%c0_14, %c0_15] : memref<128x128xbf16, #tpu.memory_space<vmem>>, vector<128x128xbf16>
    %cst_16 = arith.constant dense<0.000000e+00> : vector<8x128xf32>
    %32 = tpu.matmul %30, %31, %cst_16 {dimension_numbers = #tpu.dot_dimension_numbers<[1], [0], [0], [1], [0, 0, 1, 1], [], []>} : vector<8x128xbf16>, vector<128x128xbf16>, vector<8x128xf32> -> vector<8x128xf32>
    %c0_17 = arith.constant 0 : index
    %c0_18 = arith.constant 0 : index
    %33 = vector.load %arg7[%c0_17, %c0_18] : memref<64x8xbf16, #tpu.memory_space<vmem>>, vector<64x8xbf16>
    %34 = arith.truncf %32 : vector<8x128xf32> to vector<8x128xbf16>
    %cst_19 = arith.constant dense<0.000000e+00> : vector<64x128xf32>
    %35 = tpu.matmul %33, %34, %cst_19 {dimension_numbers = #tpu.dot_dimension_numbers<[1], [0], [0], [1], [0, 0, 1, 1], [], []>} : vector<64x8xbf16>, vector<8x128xbf16>, vector<64x128xf32> -> vector<64x128xf32>
    %c0_20 = arith.constant 0 : index
    %c0_21 = arith.constant 0 : index
    %36 = vector.load %arg8[%c0_20, %c0_21] : memref<64x128xf32, #tpu.memory_space<vmem>>, vector<64x128xf32>
    %37 = arith.mulf %35, %36 : vector<64x128xf32>
    %38 = arith.truncf %37 : vector<64x128xf32> to vector<64x128xbf16>
    %c0_22 = arith.constant 0 : index
    %c0_23 = arith.constant 0 : index
    %39 = vector.load %arg9[%c0_22, %c0_23] : memref<64x128xf32, #tpu.memory_space<vmem>>, vector<64x128xf32>
    %40 = arith.mulf %35, %39 : vector<64x128xf32>
    %41 = arith.truncf %40 : vector<64x128xf32> to vector<64x128xbf16>
    %cst_24 = arith.constant dense<0.000000e+00> : vector<8x64xf32>
    %42 = tpu.matmul %30, %38, %cst_24 {dimension_numbers = #tpu.dot_dimension_numbers<[1], [1], [0], [0], [0, 0, 1, 0], [], []>} : vector<8x128xbf16>, vector<64x128xbf16>, vector<8x64xf32> -> vector<8x64xf32>
    %c0_25 = arith.constant 0 : index
    %c0_26 = arith.constant 0 : index
    %43 = vector.load %arg10[%c0_25, %c0_26] : memref<8x64xf32, #tpu.memory_space<vmem>>, vector<8x64xf32>
    %44 = arith.addf %42, %43 : vector<8x64xf32>
    %cst_27 = arith.constant dense<0xFF800000> : vector<8xf32>
    %45 = vector.multi_reduction <maximumf>, %44, %cst_27 [1] : vector<8x64xf32> to vector<8xf32>
    %46 = vector.shape_cast %45 : vector<8xf32> to vector<8x1xf32>
    %47 = vector.broadcast %46 : vector<8x1xf32> to vector<8x64xf32>
    %48 = arith.subf %44, %47 : vector<8x64xf32>
    %49 = math.exp %48 : vector<8x64xf32>
    %50 = arith.truncf %49 : vector<8x64xf32> to vector<8x64xbf16>
    %c0_28 = arith.constant 0 : index
    %c0_29 = arith.constant 0 : index
    %51 = vector.load %arg11[%c0_28, %c0_29] : memref<64x8xbf16, #tpu.memory_space<vmem>>, vector<64x8xbf16>
    %cst_30 = arith.constant dense<0.000000e+00> : vector<8x8xf32>
    %52 = tpu.matmul %50, %51, %cst_30 {dimension_numbers = #tpu.dot_dimension_numbers<[1], [0], [0], [1], [0, 0, 1, 1], [], []>} : vector<8x64xbf16>, vector<64x8xbf16>, vector<8x8xf32> -> vector<8x8xf32>
    %53 = tpu.reciprocal %52 {approx = true} : vector<8x8xf32> -> vector<8x8xf32>
    %54 = arith.truncf %53 : vector<8x8xf32> to vector<8x8xbf16>
    %c0_31 = arith.constant 0 : index
    %c0_32 = arith.constant 0 : index
    %55 = vector.load %arg12[%c0_31, %c0_32] : memref<8x128xbf16, #tpu.memory_space<vmem>>, vector<8x128xbf16>
    %cst_33 = arith.constant dense<0.000000e+00> : vector<8x128xf32>
    %56 = tpu.matmul %54, %55, %cst_33 {dimension_numbers = #tpu.dot_dimension_numbers<[1], [0], [0], [1], [0, 0, 1, 1], [], []>} : vector<8x8xbf16>, vector<8x128xbf16>, vector<8x128xf32> -> vector<8x128xf32>
    %cst_34 = arith.constant dense<0.000000e+00> : vector<8x128xf32>
    %57 = tpu.matmul %50, %41, %cst_34 {dimension_numbers = #tpu.dot_dimension_numbers<[1], [0], [0], [1], [0, 0, 1, 1], [], []>} : vector<8x64xbf16>, vector<64x128xbf16>, vector<8x128xf32> -> vector<8x128xf32>
    %58 = arith.mulf %57, %56 : vector<8x128xf32>
    %59 = arith.truncf %58 : vector<8x128xf32> to vector<8x128xbf16>
    %c0_35 = arith.constant 0 : index
    %c0_36 = arith.constant 0 : index
    %60 = vector.load %arg13[%c0_35, %c0_36] : memref<128x32xbf16, #tpu.memory_space<vmem>>, vector<128x32xbf16>
    %cst_37 = arith.constant dense<0.000000e+00> : vector<8x32xf32>
    %61 = tpu.matmul %59, %60, %cst_37 {dimension_numbers = #tpu.dot_dimension_numbers<[1], [0], [0], [1], [0, 0, 1, 1], [], []>} : vector<8x128xbf16>, vector<128x32xbf16>, vector<8x32xf32> -> vector<8x32xf32>
    %62 = vector.extract_strided_slice %1 {offsets = [1, 0], sizes = [1, 32], strides = [1, 1]} : vector<4x32xf32> to vector<1x32xf32>
    %63 = vector.shape_cast %62 : vector<1x32xf32> to vector<32xf32>
    %64 = arith.mulf %61, %61 : vector<8x32xf32>
    %cst_38 = arith.constant dense<0.000000e+00> : vector<8xf32>
    %65 = vector.multi_reduction <add>, %64, %cst_38 [1] : vector<8x32xf32> to vector<8xf32>
    %66 = vector.shape_cast %65 : vector<8xf32> to vector<8x1xf32>
    %cst_39 = arith.constant 3.200000e+01 : f32
    %67 = vector.broadcast %cst_39 : f32 to vector<8x1xf32>
    %68 = arith.divf %66, %67 : vector<8x1xf32>
    %cst_40 = arith.constant 9.99999997E-7 : f32
    %69 = vector.broadcast %cst_40 : f32 to vector<8x1xf32>
    %70 = arith.addf %68, %69 : vector<8x1xf32>
    %71 = math.rsqrt %70 : vector<8x1xf32>
    %72 = vector.broadcast %71 : vector<8x1xf32> to vector<8x32xf32>
    %73 = arith.mulf %61, %72 : vector<8x32xf32>
    %74 = vector.shape_cast %63 : vector<32xf32> to vector<1x32xf32>
    %75 = vector.broadcast %74 : vector<1x32xf32> to vector<8x32xf32>
    %76 = arith.mulf %73, %75 : vector<8x32xf32>
    %77 = arith.addf %0, %76 : vector<8x32xf32>
    %78 = vector.extract_strided_slice %1 {offsets = [2, 0], sizes = [1, 32], strides = [1, 1]} : vector<4x32xf32> to vector<1x32xf32>
    %79 = vector.shape_cast %78 : vector<1x32xf32> to vector<32xf32>
    %80 = arith.mulf %77, %77 : vector<8x32xf32>
    %cst_41 = arith.constant dense<0.000000e+00> : vector<8xf32>
    %81 = vector.multi_reduction <add>, %80, %cst_41 [1] : vector<8x32xf32> to vector<8xf32>
    %82 = vector.shape_cast %81 : vector<8xf32> to vector<8x1xf32>
    %cst_42 = arith.constant 3.200000e+01 : f32
    %83 = vector.broadcast %cst_42 : f32 to vector<8x1xf32>
    %84 = arith.divf %82, %83 : vector<8x1xf32>
    %cst_43 = arith.constant 9.99999997E-7 : f32
    %85 = vector.broadcast %cst_43 : f32 to vector<8x1xf32>
    %86 = arith.addf %84, %85 : vector<8x1xf32>
    %87 = math.rsqrt %86 : vector<8x1xf32>
    %88 = vector.broadcast %87 : vector<8x1xf32> to vector<8x32xf32>
    %89 = arith.mulf %77, %88 : vector<8x32xf32>
    %90 = vector.shape_cast %79 : vector<32xf32> to vector<1x32xf32>
    %91 = vector.broadcast %90 : vector<1x32xf32> to vector<8x32xf32>
    %92 = arith.mulf %89, %91 : vector<8x32xf32>
    %93 = arith.truncf %92 : vector<8x32xf32> to vector<8x32xbf16>
    %c0_44 = arith.constant 0 : index
    %c0_45 = arith.constant 0 : index
    %94 = vector.load %arg14[%c0_44, %c0_45] : memref<32x128xbf16, #tpu.memory_space<vmem>>, vector<32x128xbf16>
    %cst_46 = arith.constant dense<0.000000e+00> : vector<8x128xf32>
    %95 = tpu.matmul %93, %94, %cst_46 {dimension_numbers = #tpu.dot_dimension_numbers<[1], [0], [0], [1], [0, 0, 1, 1], [], []>} : vector<8x32xbf16>, vector<32x128xbf16>, vector<8x128xf32> -> vector<8x128xf32>
    %cst_47 = arith.constant 0.000000e+00 : f32
    %96 = vector.broadcast %cst_47 : f32 to vector<8x128xf32>
    %97 = arith.subf %96, %95 : vector<8x128xf32>
    %98 = math.exp %97 : vector<8x128xf32>
    %cst_48 = arith.constant 1.000000e+00 : f32
    %99 = vector.broadcast %cst_48 : f32 to vector<8x128xf32>
    %100 = arith.addf %99, %98 : vector<8x128xf32>
    %101 = tpu.reciprocal %100 {approx = true} : vector<8x128xf32> -> vector<8x128xf32>
    %102 = arith.mulf %95, %101 : vector<8x128xf32>
    %c64_i32 = arith.constant 64 : i32
    %103 = tpu.dynamic_rotate %95 by %c64_i32 dim 1 : vector<8x128xf32>, i32 -> vector<8x128xf32>
    %104 = arith.mulf %102, %103 : vector<8x128xf32>
    %105 = arith.truncf %104 : vector<8x128xf32> to vector<8x128xbf16>
    %c0_49 = arith.constant 0 : index
    %c0_50 = arith.constant 0 : index
    %106 = vector.load %arg15[%c0_49, %c0_50] : memref<128x32xbf16, #tpu.memory_space<vmem>>, vector<128x32xbf16>
    %cst_51 = arith.constant dense<0.000000e+00> : vector<8x32xf32>
    %107 = tpu.matmul %105, %106, %cst_51 {dimension_numbers = #tpu.dot_dimension_numbers<[1], [0], [0], [1], [0, 0, 1, 1], [], []>} : vector<8x128xbf16>, vector<128x32xbf16>, vector<8x32xf32> -> vector<8x32xf32>
    %108 = vector.extract_strided_slice %1 {offsets = [3, 0], sizes = [1, 32], strides = [1, 1]} : vector<4x32xf32> to vector<1x32xf32>
    %109 = vector.shape_cast %108 : vector<1x32xf32> to vector<32xf32>
    %110 = arith.mulf %107, %107 : vector<8x32xf32>
    %cst_52 = arith.constant dense<0.000000e+00> : vector<8xf32>
    %111 = vector.multi_reduction <add>, %110, %cst_52 [1] : vector<8x32xf32> to vector<8xf32>
    %112 = vector.shape_cast %111 : vector<8xf32> to vector<8x1xf32>
    %cst_53 = arith.constant 3.200000e+01 : f32
    %113 = vector.broadcast %cst_53 : f32 to vector<8x1xf32>
    %114 = arith.divf %112, %113 : vector<8x1xf32>
    %cst_54 = arith.constant 9.99999997E-7 : f32
    %115 = vector.broadcast %cst_54 : f32 to vector<8x1xf32>
    %116 = arith.addf %114, %115 : vector<8x1xf32>
    %117 = math.rsqrt %116 : vector<8x1xf32>
    %118 = vector.broadcast %117 : vector<8x1xf32> to vector<8x32xf32>
    %119 = arith.mulf %107, %118 : vector<8x32xf32>
    %120 = vector.shape_cast %109 : vector<32xf32> to vector<1x32xf32>
    %121 = vector.broadcast %120 : vector<1x32xf32> to vector<8x32xf32>
    %122 = arith.mulf %119, %121 : vector<8x32xf32>
    %123 = arith.addf %77, %122 : vector<8x32xf32>
    %c0_55 = arith.constant 0 : index
    %c0_56 = arith.constant 0 : index
    %124 = vector.load %arg17[%c0_55, %c0_56] : memref<8x32xf32, #tpu.memory_space<vmem>>, vector<8x32xf32>
    tpu.vector_store %arg17[%c0_55, %c0_56], %123 {strides = array<i32>} : memref<8x32xf32, #tpu.memory_space<vmem>>, vector<8x32xf32>,
    return
  }
  func.func @transform_0(%arg0: i32) -> (i32, i32) {
    %c0_i32 = arith.constant 0 : i32
    %c0_i32_0 = arith.constant 0 : i32
    return %arg0, %c0_i32 : i32, i32
  }
  func.func @transform_1(%arg0: i32) -> (i32, i32) {
    %c0_i32 = arith.constant 0 : i32
    %c0_i32_0 = arith.constant 0 : i32
    %c0_i32_1 = arith.constant 0 : i32
    return %c0_i32, %c0_i32_0 : i32, i32
  }
  func.func @transform_2(%arg0: i32) -> (i32, i32) {
    %c0_i32 = arith.constant 0 : i32
    %c0_i32_0 = arith.constant 0 : i32
    %c0_i32_1 = arith.constant 0 : i32
    return %c0_i32, %c0_i32_0 : i32, i32
  }
  func.func @transform_3(%arg0: i32) -> (i32, i32) {
    %c0_i32 = arith.constant 0 : i32
    %c0_i32_0 = arith.constant 0 : i32
    %c0_i32_1 = arith.constant 0 : i32
    return %c0_i32, %c0_i32_0 : i32, i32
  }
  func.func @transform_4(%arg0: i32) -> (i32, i32) {
    %c0_i32 = arith.constant 0 : i32
    %c0_i32_0 = arith.constant 0 : i32
    %c0_i32_1 = arith.constant 0 : i32
    return %c0_i32, %c0_i32_0 : i32, i32
  }
  func.func @transform_5(%arg0: i32) -> (i32, i32) {
    %c0_i32 = arith.constant 0 : i32
    %c0_i32_0 = arith.constant 0 : i32
    %c0_i32_1 = arith.constant 0 : i32
    return %c0_i32, %c0_i32_0 : i32, i32
  }
  func.func @transform_6(%arg0: i32) -> (i32, i32) {
    %c0_i32 = arith.constant 0 : i32
    %c0_i32_0 = arith.constant 0 : i32
    %c0_i32_1 = arith.constant 0 : i32
    return %c0_i32, %c0_i32_0 : i32, i32
  }
  func.func @transform_7(%arg0: i32) -> (i32, i32) {
    %c0_i32 = arith.constant 0 : i32
    %c0_i32_0 = arith.constant 0 : i32
    %c0_i32_1 = arith.constant 0 : i32
    return %c0_i32, %c0_i32_0 : i32, i32
  }
  func.func @transform_8(%arg0: i32) -> (i32, i32) {
    %c0_i32 = arith.constant 0 : i32
    %c0_i32_0 = arith.constant 0 : i32
    %c0_i32_1 = arith.constant 0 : i32
    return %c0_i32, %c0_i32_0 : i32, i32
  }
  func.func @transform_9(%arg0: i32) -> (i32, i32) {
    %c0_i32 = arith.constant 0 : i32
    %c0_i32_0 = arith.constant 0 : i32
    %c0_i32_1 = arith.constant 0 : i32
    return %c0_i32, %c0_i32_0 : i32, i32
  }
  func.func @transform_10(%arg0: i32) -> (i32, i32) {
    %c0_i32 = arith.constant 0 : i32
    %c0_i32_0 = arith.constant 0 : i32
    %c0_i32_1 = arith.constant 0 : i32
    return %c0_i32, %c0_i32_0 : i32, i32
  }
  func.func @transform_11(%arg0: i32) -> (i32, i32) {
    %c0_i32 = arith.constant 0 : i32
    %c0_i32_0 = arith.constant 0 : i32
    %c0_i32_1 = arith.constant 0 : i32
    return %c0_i32, %c0_i32_0 : i32, i32
  }
  func.func @transform_12(%arg0: i32) -> (i32, i32) {
    %c0_i32 = arith.constant 0 : i32
    %c0_i32_0 = arith.constant 0 : i32
    %c0_i32_1 = arith.constant 0 : i32
    return %c0_i32, %c0_i32_0 : i32, i32
  }
  func.func @transform_13(%arg0: i32) -> (i32, i32) {
    %c0_i32 = arith.constant 0 : i32
    %c0_i32_0 = arith.constant 0 : i32
    %c0_i32_1 = arith.constant 0 : i32
    return %c0_i32, %c0_i32_0 : i32, i32
  }
  func.func @transform_14(%arg0: i32) -> (i32, i32) {
    %c0_i32 = arith.constant 0 : i32
    %c0_i32_0 = arith.constant 0 : i32
    %c0_i32_1 = arith.constant 0 : i32
    return %c0_i32, %c0_i32_0 : i32, i32
  }
  func.func @transform_15(%arg0: i32) -> (i32, i32) {
    %c0_i32 = arith.constant 0 : i32
    %c0_i32_0 = arith.constant 0 : i32
    %c0_i32_1 = arith.constant 0 : i32
    return %c0_i32, %c0_i32_0 : i32, i32
  }
  func.func @transform_16(%arg0: i32) -> (i32, i32) {
    %c0_i32 = arith.constant 0 : i32
    %c0_i32_0 = arith.constant 0 : i32
    return %arg0, %c0_i32 : i32, i32
  }
}

</mosaic_0001>

<llo_original>
// kernel: decoder_layer.1
$region0: #{decoder_layer.1}
  #allocation0 [shape = 'u32[]', space=smem, size = 0x4, offset = 0x4, fixed_abs, tag = 'smem constant byte address 0x4 - core index']
  #allocation1 [shape = 'u32[144,128]{1,0:T(1,128)}', space=vmem, size = 0x12000, scoped, tag = 'internal scratch']
  %s0 = inlined_call_operand.vmem [shape: f32[16,32], index: 0, kind: input, shape index: {}]
  %s1 = inlined_call_operand.vmem [shape: f32[8,128], index: 1, kind: input, shape index: {}]
  %s2 = inlined_call_operand.vmem [shape: f32[8,128], index: 2, kind: input, shape index: {}]
  %s3 = inlined_call_operand.vmem [shape: f32[8,128], index: 3, kind: input, shape index: {}]
  %s4 = inlined_call_operand.vmem [shape: bf16[32,128], index: 4, kind: input, shape index: {}]
  %s5 = inlined_call_operand.vmem [shape: bf16[128,128], index: 5, kind: input, shape index: {}]
  %s6 = inlined_call_operand.vmem [shape: bf16[64,8], index: 6, kind: input, shape index: {}]
  %s7 = inlined_call_operand.vmem [shape: f32[64,128], index: 7, kind: input, shape index: {}]
  %s8 = inlined_call_operand.vmem [shape: f32[64,128], index: 8, kind: input, shape index: {}]
  %s9 = inlined_call_operand.vmem [shape: f32[8,64], index: 9, kind: input, shape index: {}]
  %s10 = inlined_call_operand.vmem [shape: bf16[64,8], index: 10, kind: input, shape index: {}]
  %s11 = inlined_call_operand.vmem [shape: bf16[8,128], index: 11, kind: input, shape index: {}]
  %s12 = inlined_call_operand.vmem [shape: bf16[128,32], index: 12, kind: input, shape index: {}]
  %s13 = inlined_call_operand.vmem [shape: bf16[32,128], index: 13, kind: input, shape index: {}]
  %s14 = inlined_call_operand.vmem [shape: bf16[128,32], index: 14, kind: input, shape index: {}]
  %s15 = inlined_call_operand.vmem [shape: f32[4,32], index: 15, kind: input, shape index: {}]
  %s16 = inlined_call_operand.hbm [shape: f32[16,32], index: 16, kind: output, shape index: {}]
  %s17 = sld [smem:[#allocation0]]
  $region97: #{decoder_layer.1} parent=0
    _
  %s19 = ssub.s32 1, %s17
  %s20 = scalar_select 0, %s19, %s17
  $region1: #{decoder_layer.1} parent=0
    #allocation2 [shape = 'u8[8192]{0}', space=vmem, size = 0x2000, scoped, tag = 'output window, operand 0']
    #allocation3 [shape = 's32[2]{0}', space=sflag, size = 0x8, scoped, tag = 'scoped memory for decoder_layer.1']
    %21 = vsyncpa [#allocation3], 0
    %s22 = scalar_lea.sflag [#allocation3], 1
    %23 = vsyncpa %s22, 0
    loop: start=0, step=1, limit=4
    $region2: #{decoder_layer.1} parent=1 // loop_pre_header
      _
    $region3: #{decoder_layer.1} parent=1 // loop_header
      %s25 = sphi 0, %s29
      %p26 = scmp.ge.s32.totalorder %s25, 4
      %s35 = sphi 0, %s37
      %s38 = sphi 0, %s35
      %s39 = sphi 0, %s38
      %s55 = sphi 0, %s39
      %s59 = sphi 0, %s59
      %s61 = sphi 0, %s59
      %s62 = sphi 0, %s61
      %s76 = sphi 0, %s62
      %s80 = sphi 0, %s80
      %s82 = sphi 0, %s80
      %s83 = sphi 0, %s82
      %s97 = sphi 0, %s83
      %s101 = sphi 0, %s101
      %s103 = sphi 0, %s101
      %s104 = sphi 0, %s103
      %s118 = sphi 0, %s104
      %s122 = sphi 0, %s122
      %s124 = sphi 0, %s122
      %s125 = sphi 0, %s124
      %s139 = sphi 0, %s125
      %s143 = sphi 0, %s143
      %s145 = sphi 0, %s143
      %s146 = sphi 0, %s145
      %s160 = sphi 0, %s146
      %s164 = sphi 0, %s164
      %s166 = sphi 0, %s164
      %s167 = sphi 0, %s166
      %s181 = sphi 0, %s167
      %s185 = sphi 0, %s185
      %s187 = sphi 0, %s185
      %s188 = sphi 0, %s187
      %s202 = sphi 0, %s188
      %s206 = sphi 0, %s206
      %s208 = sphi 0, %s206
      %s209 = sphi 0, %s208
      %s223 = sphi 0, %s209
      %s227 = sphi 0, %s227
      %s229 = sphi 0, %s227
      %s230 = sphi 0, %s229
      %s244 = sphi 0, %s230
      %s248 = sphi 0, %s248
      %s250 = sphi 0, %s248
      %s251 = sphi 0, %s250
      %s265 = sphi 0, %s251
      %s269 = sphi 0, %s269
      %s271 = sphi 0, %s269
      %s272 = sphi 0, %s271
      %s286 = sphi 0, %s272
      %s290 = sphi 0, %s290
      %s292 = sphi 0, %s290
      %s293 = sphi 0, %s292
      %s307 = sphi 0, %s293
      %s311 = sphi 0, %s311
      %s313 = sphi 0, %s311
      %s314 = sphi 0, %s313
      %s328 = sphi 0, %s314
      %s332 = sphi 0, %s332
      %s334 = sphi 0, %s332
      %s335 = sphi 0, %s334
      %s349 = sphi 0, %s335
      %s353 = sphi 0, %s353
      %s355 = sphi 0, %s353
      %s356 = sphi 0, %s355
      %s370 = sphi 0, %s356
      %s376 = sphi 0, %s378
      %s379 = sphi 0, %s376
      %s380 = sphi 0, %s379
      %s396 = sphi 0, %s380
    $region4: #{decoder_layer.1} parent=1 // loop_header_branch
      %28 = sbr.rel (%p26) target = $region8
    $region5: #{decoder_layer.1} parent=1 // loop_body
      %s30 = ssub.s32 %s25, 1
      %s31 = ssub.s32 %s25, 2
      %s32 = sadd.s32 %s25, 1
      %s33 = ssub.s32 %s25, %s32
      %p34 = scmp.eq.s32.totalorder %s33, 0
      %s36 = sadd.s32 %s35, 1
      %s37 = scalar_select %p34, %s35, %s36
      %p40 = pneg %p34
      %p41 = scmp.eq.s32.totalorder %s25, 1
      %p42 = por %p40, %p41
      %p43 = scmp.ne.s32.totalorder %s35, %s38
      %p44 = scmp.eq.s32.totalorder %s25, 0
      %p45 = por %p43, %p44
      %p46 = scmp.ne.s32.totalorder %s35, %s38
      %p47 = scmp.eq.s32.totalorder %s30, 1
      %p48 = por %p46, %p47
      %p49 = scmp.ne.s32.totalorder %s38, %s39
      %p50 = scmp.eq.s32.totalorder %s30, 0
      %p51 = por %p49, %p50
      %p52 = scmp.ne.s32.totalorder %s38, %s39
      %p53 = scmp.eq.s32.totalorder %s31, 1
      %p54 = por %p52, %p53
      %p56 = scmp.ne.s32.totalorder %s39, %s55
      %p57 = scmp.eq.s32.totalorder %s31, 0
      %p58 = por %p56, %p57
      %s60 = sadd.s32 %s59, 1
      %p63 = scmp.eq.s32.totalorder %s25, 1
      %p64 = scmp.ne.s32.totalorder %s59, %s61
      %p65 = scmp.eq.s32.totalorder %s25, 0
      %p66 = por %p64, %p65
      %p67 = scmp.ne.s32.totalorder %s59, %s61
      %p68 = scmp.eq.s32.totalorder %s30, 1
      %p69 = por %p67, %p68
      %p70 = scmp.ne.s32.totalorder %s61, %s62
      %p71 = scmp.eq.s32.totalorder %s30, 0
      %p72 = por %p70, %p71
      %p73 = scmp.ne.s32.totalorder %s61, %s62
      %p74 = scmp.eq.s32.totalorder %s31, 1
      %p75 = por %p73, %p74
      %p77 = scmp.ne.s32.totalorder %s62, %s76
      %p78 = scmp.eq.s32.totalorder %s31, 0
      %p79 = por %p77, %p78
      %s81 = sadd.s32 %s80, 1
      %p84 = scmp.eq.s32.totalorder %s25, 1
      %p85 = scmp.ne.s32.totalorder %s80, %s82
      %p86 = scmp.eq.s32.totalorder %s25, 0
      %p87 = por %p85, %p86
      %p88 = scmp.ne.s32.totalorder %s80, %s82
      %p89 = scmp.eq.s32.totalorder %s30, 1
      %p90 = por %p88, %p89
      %p91 = scmp.ne.s32.totalorder %s82, %s83
      %p92 = scmp.eq.s32.totalorder %s30, 0
      %p93 = por %p91, %p92
      %p94 = scmp.ne.s32.totalorder %s82, %s83
      %p95 = scmp.eq.s32.totalorder %s31, 1
      %p96 = por %p94, %p95
      %p98 = scmp.ne.s32.totalorder %s83, %s97
      %p99 = scmp.eq.s32.totalorder %s31, 0
      %p100 = por %p98, %p99
      %s102 = sadd.s32 %s101, 1
      %p105 = scmp.eq.s32.totalorder %s25, 1
      %p106 = scmp.ne.s32.totalorder %s101, %s103
      %p107 = scmp.eq.s32.totalorder %s25, 0
      %p108 = por %p106, %p107
      %p109 = scmp.ne.s32.totalorder %s101, %s103
      %p110 = scmp.eq.s32.totalorder %s30, 1
      %p111 = por %p109, %p110
      %p112 = scmp.ne.s32.totalorder %s103, %s104
      %p113 = scmp.eq.s32.totalorder %s30, 0
      %p114 = por %p112, %p113
      %p115 = scmp.ne.s32.totalorder %s103, %s104
      %p116 = scmp.eq.s32.totalorder %s31, 1
      %p117 = por %p115, %p116
      %p119 = scmp.ne.s32.totalorder %s104, %s118
      %p120 = scmp.eq.s32.totalorder %s31, 0
      %p121 = por %p119, %p120
      %s123 = sadd.s32 %s122, 1
      %p126 = scmp.eq.s32.totalorder %s25, 1
      %p127 = scmp.ne.s32.totalorder %s122, %s124
      %p128 = scmp.eq.s32.totalorder %s25, 0
      %p129 = por %p127, %p128
      %p130 = scmp.ne.s32.totalorder %s122, %s124
      %p131 = scmp.eq.s32.totalorder %s30, 1
      %p132 = por %p130, %p131
      %p133 = scmp.ne.s32.totalorder %s124, %s125
      %p134 = scmp.eq.s32.totalorder %s30, 0
      %p135 = por %p133, %p134
      %p136 = scmp.ne.s32.totalorder %s124, %s125
      %p137 = scmp.eq.s32.totalorder %s31, 1
      %p138 = por %p136, %p137
      %p140 = scmp.ne.s32.totalorder %s125, %s139
      %p141 = scmp.eq.s32.totalorder %s31, 0
      %p142 = por %p140, %p141
      %s144 = sadd.s32 %s143, 1
      %p147 = scmp.eq.s32.totalorder %s25, 1
      %p148 = scmp.ne.s32.totalorder %s143, %s145
      %p149 = scmp.eq.s32.totalorder %s25, 0
      %p150 = por %p148, %p149
      %p151 = scmp.ne.s32.totalorder %s143, %s145
      %p152 = scmp.eq.s32.totalorder %s30, 1
      %p153 = por %p151, %p152
      %p154 = scmp.ne.s32.totalorder %s145, %s146
      %p155 = scmp.eq.s32.totalorder %s30, 0
      %p156 = por %p154, %p155
      %p157 = scmp.ne.s32.totalorder %s145, %s146
      %p158 = scmp.eq.s32.totalorder %s31, 1
      %p159 = por %p157, %p158
      %p161 = scmp.ne.s32.totalorder %s146, %s160
      %p162 = scmp.eq.s32.totalorder %s31, 0
      %p163 = por %p161, %p162
      %s165 = sadd.s32 %s164, 1
      %p168 = scmp.eq.s32.totalorder %s25, 1
      %p169 = scmp.ne.s32.totalorder %s164, %s166
      %p170 = scmp.eq.s32.totalorder %s25, 0
      %p171 = por %p169, %p170
      %p172 = scmp.ne.s32.totalorder %s164, %s166
      %p173 = scmp.eq.s32.totalorder %s30, 1
      %p174 = por %p172, %p173
      %p175 = scmp.ne.s32.totalorder %s166, %s167
      %p176 = scmp.eq.s32.totalorder %s30, 0
      %p177 = por %p175, %p176
      %p178 = scmp.ne.s32.totalorder %s166, %s167
      %p179 = scmp.eq.s32.totalorder %s31, 1
      %p180 = por %p178, %p179
      %p182 = scmp.ne.s32.totalorder %s167, %s181
      %p183 = scmp.eq.s32.totalorder %s31, 0
      %p184 = por %p182, %p183
      %s186 = sadd.s32 %s185, 1
      %p189 = scmp.eq.s32.totalorder %s25, 1
      %p190 = scmp.ne.s32.totalorder %s185, %s187
      %p191 = scmp.eq.s32.totalorder %s25, 0
      %p192 = por %p190, %p191
      %p193 = scmp.ne.s32.totalorder %s185, %s187
      %p194 = scmp.eq.s32.totalorder %s30, 1
      %p195 = por %p193, %p194
      %p196 = scmp.ne.s32.totalorder %s187, %s188
      %p197 = scmp.eq.s32.totalorder %s30, 0
      %p198 = por %p196, %p197
      %p199 = scmp.ne.s32.totalorder %s187, %s188
      %p200 = scmp.eq.s32.totalorder %s31, 1
      %p201 = por %p199, %p200
      %p203 = scmp.ne.s32.totalorder %s188, %s202
      %p204 = scmp.eq.s32.totalorder %s31, 0
      %p205 = por %p203, %p204
      %s207 = sadd.s32 %s206, 1
      %p210 = scmp.eq.s32.totalorder %s25, 1
      %p211 = scmp.ne.s32.totalorder %s206, %s208
      %p212 = scmp.eq.s32.totalorder %s25, 0
      %p213 = por %p211, %p212
      %p214 = scmp.ne.s32.totalorder %s206, %s208
      %p215 = scmp.eq.s32.totalorder %s30, 1
      %p216 = por %p214, %p215
      %p217 = scmp.ne.s32.totalorder %s208, %s209
      %p218 = scmp.eq.s32.totalorder %s30, 0
      %p219 = por %p217, %p218
      %p220 = scmp.ne.s32.totalorder %s208, %s209
      %p221 = scmp.eq.s32.totalorder %s31, 1
      %p222 = por %p220, %p221
      %p224 = scmp.ne.s32.totalorder %s209, %s223
      %p225 = scmp.eq.s32.totalorder %s31, 0
      %p226 = por %p224, %p225
      %s228 = sadd.s32 %s227, 1
      %p231 = scmp.eq.s32.totalorder %s25, 1
      %p232 = scmp.ne.s32.totalorder %s227, %s229
      %p233 = scmp.eq.s32.totalorder %s25, 0
      %p234 = por %p232, %p233
      %p235 = scmp.ne.s32.totalorder %s227, %s229
      %p236 = scmp.eq.s32.totalorder %s30, 1
      %p237 = por %p235, %p236
      %p238 = scmp.ne.s32.totalorder %s229, %s230
      %p239 = scmp.eq.s32.totalorder %s30, 0
      %p240 = por %p238, %p239
      %p241 = scmp.ne.s32.totalorder %s229, %s230
      %p242 = scmp.eq.s32.totalorder %s31, 1
      %p243 = por %p241, %p242
      %p245 = scmp.ne.s32.totalorder %s230, %s244
      %p246 = scmp.eq.s32.totalorder %s31, 0
      %p247 = por %p245, %p246
      %s249 = sadd.s32 %s248, 1
      %p252 = scmp.eq.s32.totalorder %s25, 1
      %p253 = scmp.ne.s32.totalorder %s248, %s250
      %p254 = scmp.eq.s32.totalorder %s25, 0
      %p255 = por %p253, %p254
      %p256 = scmp.ne.s32.totalorder %s248, %s250
      %p257 = scmp.eq.s32.totalorder %s30, 1
      %p258 = por %p256, %p257
      %p259 = scmp.ne.s32.totalorder %s250, %s251
      %p260 = scmp.eq.s32.totalorder %s30, 0
      %p261 = por %p259, %p260
      %p262 = scmp.ne.s32.totalorder %s250, %s251
      %p263 = scmp.eq.s32.totalorder %s31, 1
      %p264 = por %p262, %p263
      %p266 = scmp.ne.s32.totalorder %s251, %s265
      %p267 = scmp.eq.s32.totalorder %s31, 0
      %p268 = por %p266, %p267
      %s270 = sadd.s32 %s269, 1
      %p273 = scmp.eq.s32.totalorder %s25, 1
      %p274 = scmp.ne.s32.totalorder %s269, %s271
      %p275 = scmp.eq.s32.totalorder %s25, 0
      %p276 = por %p274, %p275
      %p277 = scmp.ne.s32.totalorder %s269, %s271
      %p278 = scmp.eq.s32.totalorder %s30, 1
      %p279 = por %p277, %p278
      %p280 = scmp.ne.s32.totalorder %s271, %s272
      %p281 = scmp.eq.s32.totalorder %s30, 0
      %p282 = por %p280, %p281
      %p283 = scmp.ne.s32.totalorder %s271, %s272
      %p284 = scmp.eq.s32.totalorder %s31, 1
      %p285 = por %p283, %p284
      %p287 = scmp.ne.s32.totalorder %s272, %s286
      %p288 = scmp.eq.s32.totalorder %s31, 0
      %p289 = por %p287, %p288
      %s291 = sadd.s32 %s290, 1
      %p294 = scmp.eq.s32.totalorder %s25, 1
      %p295 = scmp.ne.s32.totalorder %s290, %s292
      %p296 = scmp.eq.s32.totalorder %s25, 0
      %p297 = por %p295, %p296
      %p298 = scmp.ne.s32.totalorder %s290, %s292
      %p299 = scmp.eq.s32.totalorder %s30, 1
      %p300 = por %p298, %p299
      %p301 = scmp.ne.s32.totalorder %s292, %s293
      %p302 = scmp.eq.s32.totalorder %s30, 0
      %p303 = por %p301, %p302
      %p304 = scmp.ne.s32.totalorder %s292, %s293
      %p305 = scmp.eq.s32.totalorder %s31, 1
      %p306 = por %p304, %p305
      %p308 = scmp.ne.s32.totalorder %s293, %s307
      %p309 = scmp.eq.s32.totalorder %s31, 0
      %p310 = por %p308, %p309
      %s312 = sadd.s32 %s311, 1
      %p315 = scmp.eq.s32.totalorder %s25, 1
      %p316 = scmp.ne.s32.totalorder %s311, %s313
      %p317 = scmp.eq.s32.totalorder %s25, 0
      %p318 = por %p316, %p317
      %p319 = scmp.ne.s32.totalorder %s311, %s313
      %p320 = scmp.eq.s32.totalorder %s30, 1
      %p321 = por %p319, %p320
      %p322 = scmp.ne.s32.totalorder %s313, %s314
      %p323 = scmp.eq.s32.totalorder %s30, 0
      %p324 = por %p322, %p323
      %p325 = scmp.ne.s32.totalorder %s313, %s314
      %p326 = scmp.eq.s32.totalorder %s31, 1
      %p327 = por %p325, %p326
      %p329 = scmp.ne.s32.totalorder %s314, %s328
      %p330 = scmp.eq.s32.totalorder %s31, 0
      %p331 = por %p329, %p330
      %s333 = sadd.s32 %s332, 1
      %p336 = scmp.eq.s32.totalorder %s25, 1
      %p337 = scmp.ne.s32.totalorder %s332, %s334
      %p338 = scmp.eq.s32.totalorder %s25, 0
      %p339 = por %p337, %p338
      %p340 = scmp.ne.s32.totalorder %s332, %s334
      %p341 = scmp.eq.s32.totalorder %s30, 1
      %p342 = por %p340, %p341
      %p343 = scmp.ne.s32.totalorder %s334, %s335
      %p344 = scmp.eq.s32.totalorder %s30, 0
      %p345 = por %p343, %p344
      %p346 = scmp.ne.s32.totalorder %s334, %s335
      %p347 = scmp.eq.s32.totalorder %s31, 1
      %p348 = por %p346, %p347
      %p350 = scmp.ne.s32.totalorder %s335, %s349
      %p351 = scmp.eq.s32.totalorder %s31, 0
      %p352 = por %p350, %p351
      %s354 = sadd.s32 %s353, 1
      %p357 = scmp.eq.s32.totalorder %s25, 1
      %p358 = scmp.ne.s32.totalorder %s353, %s355
      %p359 = scmp.eq.s32.totalorder %s25, 0
      %p360 = por %p358, %p359
      %p361 = scmp.ne.s32.totalorder %s353, %s355
      %p362 = scmp.eq.s32.totalorder %s30, 1
      %p363 = por %p361, %p362
      %p364 = scmp.ne.s32.totalorder %s355, %s356
      %p365 = scmp.eq.s32.totalorder %s30, 0
      %p366 = por %p364, %p365
      %p367 = scmp.ne.s32.totalorder %s355, %s356
      %p368 = scmp.eq.s32.totalorder %s31, 1
      %p369 = por %p367, %p368
      %p371 = scmp.ne.s32.totalorder %s356, %s370
      %p372 = scmp.eq.s32.totalorder %s31, 0
      %p373 = por %p371, %p372
      %s374 = ssub.s32 %s25, %s32
      %p375 = scmp.eq.s32.totalorder %s374, 0
      %s377 = sadd.s32 %s376, 1
      %s378 = scalar_select %p375, %s376, %s377
      %p381 = pneg %p375
      %p382 = scmp.eq.s32.totalorder %s25, 1
      %p383 = por %p381, %p382
      %p384 = scmp.ne.s32.totalorder %s376, %s379
      %p385 = scmp.eq.s32.totalorder %s25, 0
      %p386 = por %p384, %p385
      %p387 = scmp.ne.s32.totalorder %s376, %s379
      %p388 = scmp.eq.s32.totalorder %s30, 1
      %p389 = por %p387, %p388
      %p390 = scmp.ne.s32.totalorder %s379, %s380
      %p391 = scmp.eq.s32.totalorder %s30, 0
      %p392 = por %p390, %p391
      %p393 = scmp.ne.s32.totalorder %s379, %s380
      %p394 = scmp.eq.s32.totalorder %s31, 1
      %p395 = por %p393, %p394
      %p397 = scmp.ne.s32.totalorder %s380, %s396
      %p398 = scmp.eq.s32.totalorder %s31, 0
      %p399 = por %p397, %p398
      %p400 = scmp.le.s32.totalorder 1, %s25
      %p401 = scmp.lt.s32.totalorder %s25, 3
      %p402 = pnand %p400, %p401
      %p403 = pneg %p402
      // Predicated region
      $region9: #{decoder_layer.1} parent=5 // pred_check
        _
      $region10: #{decoder_layer.1} parent=5 // pred_check_branch
        %405 = sbr.rel (%p402) target = $region12
      $region11: #{decoder_layer.1} parent=5 // pred_region
        %s406 = ssub.s32 %s25, 1
        // Predicated region
        $region13: #{decoder_layer.1} parent=11 // pred_check
          %p407 = pneg %p72
        $region14: #{decoder_layer.1} parent=11 // pred_check_branch
          %409 = sbr.rel (%p407) target = $region16
        $region15: #{decoder_layer.1} parent=11 // pred_region
          _
        $region16: #{decoder_layer.1} parent=11 // pred_fallthru
          _
        // Predicated region
        $region17: #{decoder_layer.1} parent=11 // pred_check
          %p410 = pneg %p93
        $region18: #{decoder_layer.1} parent=11 // pred_check_branch
          %412 = sbr.rel (%p410) target = $region20
        $region19: #{decoder_layer.1} parent=11 // pred_region
          _
        $region20: #{decoder_layer.1} parent=11 // pred_fallthru
          _
        // Predicated region
        $region21: #{decoder_layer.1} parent=11 // pred_check
          %p413 = pneg %p114
        $region22: #{decoder_layer.1} parent=11 // pred_check_branch
          %415 = sbr.rel (%p413) target = $region24
        $region23: #{decoder_layer.1} parent=11 // pred_region
          _
        $region24: #{decoder_layer.1} parent=11 // pred_fallthru
          _
        // Predicated region
        $region25: #{decoder_layer.1} parent=11 // pred_check
          %p416 = pneg %p135
        $region26: #{decoder_layer.1} parent=11 // pred_check_branch
          %418 = sbr.rel (%p416) target = $region28
        $region27: #{decoder_layer.1} parent=11 // pred_region
          _
        $region28: #{decoder_layer.1} parent=11 // pred_fallthru
          _
        // Predicated region
        $region29: #{decoder_layer.1} parent=11 // pred_check
          %p419 = pneg %p156
        $region30: #{decoder_layer.1} parent=11 // pred_check_branch
          %421 = sbr.rel (%p419) target = $region32
        $region31: #{decoder_layer.1} parent=11 // pred_region
          _
        $region32: #{decoder_layer.1} parent=11 // pred_fallthru
          _
        // Predicated region
        $region33: #{decoder_layer.1} parent=11 // pred_check
          %p422 = pneg %p177
        $region34: #{decoder_layer.1} parent=11 // pred_check_branch
          %424 = sbr.rel (%p422) target = $region36
        $region35: #{decoder_layer.1} parent=11 // pred_region
          _
        $region36: #{decoder_layer.1} parent=11 // pred_fallthru
          _
        // Predicated region
        $region37: #{decoder_layer.1} parent=11 // pred_check
          %p425 = pneg %p198
        $region38: #{decoder_layer.1} parent=11 // pred_check_branch
          %427 = sbr.rel (%p425) target = $region40
        $region39: #{decoder_layer.1} parent=11 // pred_region
          _
        $region40: #{decoder_layer.1} parent=11 // pred_fallthru
          _
        // Predicated region
        $region41: #{decoder_layer.1} parent=11 // pred_check
          %p428 = pneg %p219
        $region42: #{decoder_layer.1} parent=11 // pred_check_branch
          %430 = sbr.rel (%p428) target = $region44
        $region43: #{decoder_layer.1} parent=11 // pred_region
          _
        $region44: #{decoder_layer.1} parent=11 // pred_fallthru
          _
        // Predicated region
        $region45: #{decoder_layer.1} parent=11 // pred_check
          %p431 = pneg %p240
        $region46: #{decoder_layer.1} parent=11 // pred_check_branch
          %433 = sbr.rel (%p431) target = $region48
        $region47: #{decoder_layer.1} parent=11 // pred_region
          _
        $region48: #{decoder_layer.1} parent=11 // pred_fallthru
          _
        // Predicated region
        $region49: #{decoder_layer.1} parent=11 // pred_check
          %p434 = pneg %p261
        $region50: #{decoder_layer.1} parent=11 // pred_check_branch
          %436 = sbr.rel (%p434) target = $region52
        $region51: #{decoder_layer.1} parent=11 // pred_region
          _
        $region52: #{decoder_layer.1} parent=11 // pred_fallthru
          _
        // Predicated region
        $region53: #{decoder_layer.1} parent=11 // pred_check
          %p437 = pneg %p282
        $region54: #{decoder_layer.1} parent=11 // pred_check_branch
          %439 = sbr.rel (%p437) target = $region56
        $region55: #{decoder_layer.1} parent=11 // pred_region
          _
        $region56: #{decoder_layer.1} parent=11 // pred_fallthru
          _
        // Predicated region
        $region57: #{decoder_layer.1} parent=11 // pred_check
          %p440 = pneg %p303
        $region58: #{decoder_layer.1} parent=11 // pred_check_branch
          %442 = sbr.rel (%p440) target = $region60
        $region59: #{decoder_layer.1} parent=11 // pred_region
          _
        $region60: #{decoder_layer.1} parent=11 // pred_fallthru
          _
        // Predicated region
        $region61: #{decoder_layer.1} parent=11 // pred_check
          %p443 = pneg %p324
        $region62: #{decoder_layer.1} parent=11 // pred_check_branch
          %445 = sbr.rel (%p443) target = $region64
        $region63: #{decoder_layer.1} parent=11 // pred_region
          _
        $region64: #{decoder_layer.1} parent=11 // pred_fallthru
          _
        // Predicated region
        $region65: #{decoder_layer.1} parent=11 // pred_check
          %p446 = pneg %p345
        $region66: #{decoder_layer.1} parent=11 // pred_check_branch
          %448 = sbr.rel (%p446) target = $region68
        $region67: #{decoder_layer.1} parent=11 // pred_region
          _
        $region68: #{decoder_layer.1} parent=11 // pred_fallthru
          _
        // Predicated region
        $region69: #{decoder_layer.1} parent=11 // pred_check
          %p449 = pneg %p366
        $region70: #{decoder_layer.1} parent=11 // pred_check_branch
          %451 = sbr.rel (%p449) target = $region72
        $region71: #{decoder_layer.1} parent=11 // pred_region
          _
        $region72: #{decoder_layer.1} parent=11 // pred_fallthru
          _
      $region12: #{decoder_layer.1} parent=5 // pred_fallthru
        _
      %p452 = scmp.lt.s32.totalorder %s25, 2
      // Predicated region
      $region73: #{decoder_layer.1} parent=5 // pred_check
        %p453 = pneg %p452
      $region74: #{decoder_layer.1} parent=5 // pred_check_branch
        %455 = sbr.rel (%p453) target = $region76
      $region75: #{decoder_layer.1} parent=5 // pred_region
        // Predicated region
        $region77: #{decoder_layer.1} parent=75 // pred_check
          %p456 = pneg %p45
        $region78: #{decoder_layer.1} parent=75 // pred_check_branch
          %458 = sbr.rel (%p456) target = $region80
        $region79: #{decoder_layer.1} parent=75 // pred_region
          %p459 = scmp.lt.s32.totalorder %s25, 1
          %s460 = scalar_select %p459, %s25, 1
          %s461 = smul.addr %s460, 8
          %s462 = scalar_lea.vmem %s0, %s461
        $region80: #{decoder_layer.1} parent=75 // pred_fallthru
          _
      $region76: #{decoder_layer.1} parent=5 // pred_fallthru
        _
      %p463 = scmp.le.s32.totalorder 1, %s25
      %p464 = scmp.lt.s32.totalorder %s25, 3
      %p465 = pnand %p463, %p464
      %p466 = pneg %p465
      // Predicated region
      $region81: #{decoder_layer.1} parent=5 // pred_check
        _
      $region82: #{decoder_layer.1} parent=5 // pred_check_branch
        %468 = sbr.rel (%p465) target = $region84
      $region83: #{decoder_layer.1} parent=5 // pred_region
        %s469 = ssub.s32 %s25, 1
        %p470 = scmp.lt.s32.totalorder %s30, 1
        %s471 = scalar_select %p470, %s30, 1
        %s472 = smul.addr %s471, 8
        %s473 = scalar_lea.vmem %s0, %s472
        %p474 = pneg %p51
        %p475 = pneg %p48
        %p476 = pneg %p72
        %p477 = pneg %p69
        %p478 = pneg %p93
        %p479 = pneg %p90
        %p480 = pneg %p114
        %p481 = pneg %p111
        %p482 = pneg %p135
        %p483 = pneg %p132
        %p484 = pneg %p156
        %p485 = pneg %p153
        %p486 = pneg %p177
        %p487 = pneg %p174
        %p488 = pneg %p198
        %p489 = pneg %p195
        %p490 = pneg %p219
        %p491 = pneg %p216
        %p492 = pneg %p240
        %p493 = pneg %p237
        %p494 = pneg %p261
        %p495 = pneg %p258
        %p496 = pneg %p282
        %p497 = pneg %p279
        %p498 = pneg %p303
        %p499 = pneg %p300
        %p500 = pneg %p324
        %p501 = pneg %p321
        %p502 = pneg %p345
        %p503 = pneg %p342
        %p504 = pneg %p366
        %p505 = pneg %p363
        %p506 = pneg %p392
        %p507 = pneg %p389
        %s508 = sand.u32 %s379, 1
        %s509 = scalar_lea.sflag [#allocation3], %s508
        %s510 = sand.u32 %s379, 1
        %s511 = smul.addr %s510, 8
        %s512 = scalar_lea.vmem [#allocation2], %s511
        %p513 = scmp.lt.s32.totalorder %s30, 1
        %s514 = scalar_select %p513, %s30, 1
        %s515 = smul.addr %s514, 8
        %s516 = scalar_lea.vmem %s0, %s515
        %v518 = vld [vmem:[%s516] sm:$0xff]
        %v519 = vld [vmem:[%s15] sm:$0xf]
        %v520 = vmul.f32 %v518, %v518
        %vm521 = vcmask 261120
        %v522 = vsel %vm521, %v520, 0.0
        %523 = vadd.xlane.f32.xlu0 %v522
        %v524 = vpop.xlane.xlu0 %523
        %v525 = vrcp.pop 32.0
        %v526 = vmul.f32 %v524, %v525
        %v527 = vadd.f32 %v526, 1e-06
        %v528 = vrsqrt.pop %v527
        %v529 = vmul.f32 %v518, %v528
        %v530 = vlaneseq
        %v531 = vshrl.u32 %v530, 7
        %v532 = vsub.s32 0, %v531
        %v533 = vrot.slane %v519, %v532
        %v534 = vmul.f32 %v529, %v533
        %v535 = vpack.c.bf16 %v534, %v534
        %v536 = vld [vmem:[%s4] sm:$0xf]
        %v537 = vld [vmem:[%s4 + $0x4] sm:$0xf]
        %v538 = vld [vmem:[%s4 + $0x8] sm:$0xf]
        %v539 = vld [vmem:[%s4 + $0xc] sm:$0xf]
        %v544 = vunpack.c.l.b16 %v536
        %v545 = vunpack.c.l.b16 %v537
        %v546 = vunpack.c.l.b16 %v538
        %v547 = vunpack.c.l.b16 %v539
        %v548 = vpack.c.b16 %v545, %v544
        %v549 = vpack.c.b16 %v547, %v546
        %v553 = vsel %vm521, %v535, 0
        %555 = vmatprep.subr.bf16.mxu0 0
        %556 = vmatpush1.bf16.msra.mxu0 0
        %557 = vmatprep.subr.bf16.mxu0 0
        %558 = vmatpush1.bf16.msra.mxu0 0
        %559 = vmatprep.subr.bf16.mxu0 0
        %560 = vmatpush1.bf16.msra.mxu0 0
        %561 = vmatprep.subr.bf16.mxu0 0
        %562 = vmatpush1.bf16.msra.mxu0 0
        %563 = vmatprep.subr.bf16.mxu0 0
        %564 = vmatpush1.bf16.msra.mxu0 0
        %565 = vmatprep.subr.bf16.mxu0 0
        %566 = vmatpush1.bf16.msra.mxu0 0
        %567 = vmatprep.subr.bf16.mxu0 0
        %568 = vmatpush1.bf16.msra.mxu0 %v549
        %569 = vmatprep.subr.bf16.mxu0 0
        %570 = vmatpush1.bf16.msra.mxu0 %v548
        %571 = vmatprep.subr.bf16.mxu0 0
        %572 = vmatpush2.bf16.msra.mxu0 0
        %573 = vmatprep.subr.bf16.mxu0 0
        %574 = vmatpush2.bf16.msra.mxu0 0
        %575 = vmatprep.subr.bf16.mxu0 0
        %576 = vmatpush2.bf16.msra.mxu0 0
        %577 = vmatprep.subr.bf16.mxu0 0
        %578 = vmatpush2.bf16.msra.mxu0 0
        %579 = vmatprep.subr.bf16.mxu0 0
        %580 = vmatpush2.bf16.msra.mxu0 0
        %581 = vmatprep.subr.bf16.mxu0 0
        %582 = vmatpush2.bf16.msra.mxu0 0
        %583 = vmatprep.subr.bf16.mxu0 0
        %584 = vmatpush2.bf16.msra.mxu0 0
        %585 = vmatprep.subr.bf16.mxu0 0
        %586 = vmatpush2.bf16.msra.mxu0 0
        %587 = vmatprep.mubr.bf16.mxu0 0
        %588 = vmatmul.mubr.bf16.gmra.mxu0 %v553
        %v589 = vpop.f32.mrf.mxu0
        %v590 = vadd.f32 0.0, %v589
        %v591 = vpop.f32.mrf.mxu0
        %v592 = vpop.f32.mrf.mxu0
        %v593 = vpop.f32.mrf.mxu0
        %594 = vdwg.mxu0
        %v595 = vld [vmem:[%s1] sm:$0xff]
        %v596 = vmul.f32 %v590, %v595
        %597 = vrot.lane.b32.xlu0 %v590, 124
        %v598 = vpop.permute.xlu0 %597
        %v599 = vld [vmem:[%s2] sm:$0xff]
        %v600 = vmul.f32 %v598, %v599
        %v601 = vadd.f32 %v596, %v600
        %602 = vrot.lane.b32.xlu0 %v590, 4
        %v603 = vpop.permute.xlu0 %602
        %v604 = vld [vmem:[%s3] sm:$0xff]
        %v605 = vmul.f32 %v603, %v604
        %v606 = vadd.f32 %v601, %v605
        %v607 = vpack.c.bf16 %v606, %v606
        %v608 = vld [vmem:[%s5] sm:$0xf]
        %v609 = vld [vmem:[%s5 + $0x4] sm:$0xf]
        %v610 = vld [vmem:[%s5 + $0x8] sm:$0xf]
        %v611 = vld [vmem:[%s5 + $0xc] sm:$0xf]
        %v612 = vld [vmem:[%s5 + $0x10] sm:$0xf]
        %v613 = vld [vmem:[%s5 + $0x14] sm:$0xf]
        %v614 = vld [vmem:[%s5 + $0x18] sm:$0xf]
        %v615 = vld [vmem:[%s5 + $0x1c] sm:$0xf]
        %v616 = vld [vmem:[%s5 + $0x20] sm:$0xf]
        %v617 = vld [vmem:[%s5 + $0x24] sm:$0xf]
        %v618 = vld [vmem:[%s5 + $0x28] sm:$0xf]
        %v619 = vld [vmem:[%s5 + $0x2c] sm:$0xf]
        %v620 = vld [vmem:[%s5 + $0x30] sm:$0xf]
        %v621 = vld [vmem:[%s5 + $0x34] sm:$0xf]
        %v622 = vld [vmem:[%s5 + $0x38] sm:$0xf]
        %v623 = vld [vmem:[%s5 + $0x3c] sm:$0xf]
        %v640 = vunpack.c.l.b16 %v608
        %v641 = vunpack.c.l.b16 %v609
        %v642 = vunpack.c.l.b16 %v610
        %v643 = vunpack.c.l.b16 %v611
        %v644 = vunpack.c.l.b16 %v612
        %v645 = vunpack.c.l.b16 %v613
        %v646 = vunpack.c.l.b16 %v614
        %v647 = vunpack.c.l.b16 %v615
        %v648 = vunpack.c.l.b16 %v616
        %v649 = vunpack.c.l.b16 %v617
        %v650 = vunpack.c.l.b16 %v618
        %v651 = vunpack.c.l.b16 %v619
        %v652 = vunpack.c.l.b16 %v620
        %v653 = vunpack.c.l.b16 %v621
        %v654 = vunpack.c.l.b16 %v622
        %v655 = vunpack.c.l.b16 %v623
        %v656 = vpack.c.b16 %v641, %v640
        %v657 = vpack.c.b16 %v643, %v642
        %v658 = vpack.c.b16 %v645, %v644
        %v659 = vpack.c.b16 %v647, %v646
        %v660 = vpack.c.b16 %v649, %v648
        %v661 = vpack.c.b16 %v651, %v650
        %v662 = vpack.c.b16 %v653, %v652
        %v663 = vpack.c.b16 %v655, %v654
        %672 = vmatprep.subr.bf16.mxu0 0
        %673 = vmatpush1.bf16.msra.mxu0 %v663
        %674 = vmatprep.subr.bf16.mxu0 0
        %675 = vmatpush1.bf16.msra.mxu0 %v662
        %676 = vmatprep.subr.bf16.mxu0 0
        %677 = vmatpush1.bf16.msra.mxu0 %v661
        %678 = vmatprep.subr.bf16.mxu0 0
        %679 = vmatpush1.bf16.msra.mxu0 %v660
        %680 = vmatprep.subr.bf16.mxu0 0
        %681 = vmatpush1.bf16.msra.mxu0 %v659
        %682 = vmatprep.subr.bf16.mxu0 0
        %683 = vmatpush1.bf16.msra.mxu0 %v658
        %684 = vmatprep.subr.bf16.mxu0 0
        %685 = vmatpush1.bf16.msra.mxu0 %v657
        %686 = vmatprep.subr.bf16.mxu0 0
        %687 = vmatpush1.bf16.msra.mxu0 %v656
        %688 = vmatprep.subr.bf16.mxu0 0
        %689 = vmatpush2.bf16.msra.mxu0 0
        %690 = vmatprep.subr.bf16.mxu0 0
        %691 = vmatpush2.bf16.msra.mxu0 0
        %692 = vmatprep.subr.bf16.mxu0 0
        %693 = vmatpush2.bf16.msra.mxu0 0
        %694 = vmatprep.subr.bf16.mxu0 0
        %695 = vmatpush2.bf16.msra.mxu0 0
        %696 = vmatprep.subr.bf16.mxu0 0
        %697 = vmatpush2.bf16.msra.mxu0 0
        %698 = vmatprep.subr.bf16.mxu0 0
        %699 = vmatpush2.bf16.msra.mxu0 0
        %700 = vmatprep.subr.bf16.mxu0 0
        %701 = vmatpush2.bf16.msra.mxu0 0
        %702 = vmatprep.subr.bf16.mxu0 0
        %703 = vmatpush2.bf16.msra.mxu0 0
        %704 = vmatprep.mubr.bf16.mxu0 0
        %705 = vmatmul.mubr.bf16.gmra.mxu0 %v607
        %v706 = vpop.f32.mrf.mxu0
        %v707 = vadd.f32 0.0, %v706
        %v708 = vpop.f32.mrf.mxu0
        %v709 = vpop.f32.mrf.mxu0
        %v710 = vpop.f32.mrf.mxu0
        %711 = vdwg.mxu0
        %v712 = vld [vmem:[%s6] sm:$0xf]
        %v713 = vld [vmem:[%s6 + $0x4] sm:$0xf]
        %v714 = vld [vmem:[%s6 + $0x8] sm:$0xf]
        %v715 = vld [vmem:[%s6 + $0xc] sm:$0xf]
        %v716 = vld [vmem:[%s6 + $0x10] sm:$0xf]
        %v717 = vld [vmem:[%s6 + $0x14] sm:$0xf]
        %v718 = vld [vmem:[%s6 + $0x18] sm:$0xf]
        %v719 = vld [vmem:[%s6 + $0x1c] sm:$0xf]
        %v720 = vpack.c.bf16 %v707, %v707
        %v729 = vunpack.c.l.b16 %v712
        %v730 = vunpack.c.l.b16 %v713
        %v731 = vunpack.c.l.b16 %v714
        %v732 = vunpack.c.l.b16 %v715
        %v733 = vunpack.c.l.b16 %v716
        %v734 = vunpack.c.l.b16 %v717
        %v735 = vunpack.c.l.b16 %v718
        %v736 = vunpack.c.l.b16 %v719
        %v737 = vpack.c.b16 %v730, %v729
        %v738 = vpack.c.b16 %v732, %v731
        %v739 = vpack.c.b16 %v734, %v733
        %v740 = vpack.c.b16 %v736, %v735
        %vm741 = vcmask 64512
        %v743 = vsel %vm741, %v737, 0
        %v746 = vsel %vm741, %v738, 0
        %v749 = vsel %vm741, %v739, 0
        %v752 = vsel %vm741, %v740, 0
        %vm754 = vcmask 1043456
        %v756 = vsel %vm754, %v720, 0
        %758 = vmatprep.subr.bf16.mxu0 0
        %759 = vmatpush1.bf16.msra.mxu0 0
        %760 = vmatprep.subr.bf16.mxu0 0
        %761 = vmatpush1.bf16.msra.mxu0 0
        %762 = vmatprep.subr.bf16.mxu0 0
        %763 = vmatpush1.bf16.msra.mxu0 0
        %764 = vmatprep.subr.bf16.mxu0 0
        %765 = vmatpush1.bf16.msra.mxu0 0
        %766 = vmatprep.subr.bf16.mxu0 0
        %767 = vmatpush1.bf16.msra.mxu0 0
        %768 = vmatprep.subr.bf16.mxu0 0
        %769 = vmatpush1.bf16.msra.mxu0 0
        %770 = vmatprep.subr.bf16.mxu0 0
        %771 = vmatpush1.bf16.msra.mxu0 0
        %772 = vmatprep.subr.bf16.mxu0 0
        %773 = vmatpush1.bf16.msra.mxu0 %v756
        %774 = vmatprep.subr.bf16.mxu0 0
        %775 = vmatpush2.bf16.msra.mxu0 0
        %776 = vmatprep.subr.bf16.mxu0 0
        %777 = vmatpush2.bf16.msra.mxu0 0
        %778 = vmatprep.subr.bf16.mxu0 0
        %779 = vmatpush2.bf16.msra.mxu0 0
        %780 = vmatprep.subr.bf16.mxu0 0
        %781 = vmatpush2.bf16.msra.mxu0 0
        %782 = vmatprep.subr.bf16.mxu0 0
        %783 = vmatpush2.bf16.msra.mxu0 0
        %784 = vmatprep.subr.bf16.mxu0 0
        %785 = vmatpush2.bf16.msra.mxu0 0
        %786 = vmatprep.subr.bf16.mxu0 0
        %787 = vmatpush2.bf16.msra.mxu0 0
        %788 = vmatprep.subr.bf16.mxu0 0
        %789 = vmatpush2.bf16.msra.mxu0 0
        %790 = vmatprep.mubr.bf16.mxu0 0
        %791 = vmatmul.mubr.bf16.gmra.mxu0 %v743
        %v792 = vpop.f32.mrf.mxu0
        %v793 = vadd.f32 0.0, %v792
        %v794 = vpop.f32.mrf.mxu0
        %v795 = vpop.f32.mrf.mxu0
        %v796 = vadd.f32 0.0, %v795
        %v797 = vpop.f32.mrf.mxu0
        %798 = vmatprep.mubr.bf16.mxu0 0
        %799 = vmatmul.mubr.bf16.gmra.mxu0 %v746
        %v800 = vpop.f32.mrf.mxu0
        %v801 = vadd.f32 0.0, %v800
        %v802 = vpop.f32.mrf.mxu0
        %v803 = vpop.f32.mrf.mxu0
        %v804 = vadd.f32 0.0, %v803
        %v805 = vpop.f32.mrf.mxu0
        %806 = vmatprep.mubr.bf16.mxu0 0
        %807 = vmatmul.mubr.bf16.gmra.mxu0 %v749
        %v808 = vpop.f32.mrf.mxu0
        %v809 = vadd.f32 0.0, %v808
        %v810 = vpop.f32.mrf.mxu0
        %v811 = vpop.f32.mrf.mxu0
        %v812 = vadd.f32 0.0, %v811
        %v813 = vpop.f32.mrf.mxu0
        %814 = vmatprep.mubr.bf16.mxu0 0
        %815 = vmatmul.mubr.bf16.gmra.mxu0 %v752
        %v816 = vpop.f32.mrf.mxu0
        %v817 = vadd.f32 0.0, %v816
        %v818 = vpop.f32.mrf.mxu0
        %v819 = vpop.f32.mrf.mxu0
        %v820 = vadd.f32 0.0, %v819
        %v821 = vpop.f32.mrf.mxu0
        %822 = vdwg.mxu0
        %v823 = vld [vmem:[%s7] sm:$0xff]
        %v824 = vld [vmem:[%s7 + $0x8] sm:$0xff]
        %v825 = vld [vmem:[%s7 + $0x10] sm:$0xff]
        %v826 = vld [vmem:[%s7 + $0x18] sm:$0xff]
        %v827 = vld [vmem:[%s7 + $0x20] sm:$0xff]
        %v828 = vld [vmem:[%s7 + $0x28] sm:$0xff]
        %v829 = vld [vmem:[%s7 + $0x30] sm:$0xff]
        %v830 = vld [vmem:[%s7 + $0x38] sm:$0xff]
        %v831 = vmul.f32 %v793, %v823
        %v832 = vmul.f32 %v796, %v824
        %v833 = vmul.f32 %v801, %v825
        %v834 = vmul.f32 %v804, %v826
        %v835 = vmul.f32 %v809, %v827
        %v836 = vmul.f32 %v812, %v828
        %v837 = vmul.f32 %v817, %v829
        %v838 = vmul.f32 %v820, %v830
        %v839 = vpack.c.bf16 %v832, %v831
        %v840 = vpack.c.bf16 %v834, %v833
        %v841 = vpack.c.bf16 %v836, %v835
        %v842 = vpack.c.bf16 %v838, %v837
        %v843 = vld [vmem:[%s8] sm:$0xff]
        %v844 = vld [vmem:[%s8 + $0x8] sm:$0xff]
        %v845 = vld [vmem:[%s8 + $0x10] sm:$0xff]
        %v846 = vld [vmem:[%s8 + $0x18] sm:$0xff]
        %v847 = vld [vmem:[%s8 + $0x20] sm:$0xff]
        %v848 = vld [vmem:[%s8 + $0x28] sm:$0xff]
        %v849 = vld [vmem:[%s8 + $0x30] sm:$0xff]
        %v850 = vld [vmem:[%s8 + $0x38] sm:$0xff]
        %v851 = vmul.f32 %v793, %v843
        %v852 = vmul.f32 %v796, %v844
        %v853 = vmul.f32 %v801, %v845
        %v854 = vmul.f32 %v804, %v846
        %v855 = vmul.f32 %v809, %v847
        %v856 = vmul.f32 %v812, %v848
        %v857 = vmul.f32 %v817, %v849
        %v858 = vmul.f32 %v820, %v850
        %v859 = vpack.c.bf16 %v852, %v851
        %v860 = vpack.c.bf16 %v854, %v853
        %v861 = vpack.c.bf16 %v856, %v855
        %v862 = vpack.c.bf16 %v858, %v857
        %v863 = vld [vmem:[%s9] sm:$0xff]
        %864 = vmatprep.subr.bf16.mxu0 0
        %865 = vmatpush1.bf16.xpose.msra.mxu0 0
        %866 = vmatprep.subr.bf16.mxu0 0
        %867 = vmatpush1.bf16.xpose.msra.mxu0 0
        %868 = vmatprep.subr.bf16.mxu0 0
        %869 = vmatpush1.bf16.xpose.msra.mxu0 0
        %870 = vmatprep.subr.bf16.mxu0 0
        %871 = vmatpush1.bf16.xpose.msra.mxu0 0
        %872 = vmatprep.subr.bf16.mxu0 0
        %873 = vmatpush1.bf16.xpose.msra.mxu0 %v842
        %874 = vmatprep.subr.bf16.mxu0 0
        %875 = vmatpush1.bf16.xpose.msra.mxu0 %v841
        %876 = vmatprep.subr.bf16.mxu0 0
        %877 = vmatpush1.bf16.xpose.msra.mxu0 %v840
        %878 = vmatprep.subr.bf16.mxu0 0
        %879 = vmatpush1.bf16.xpose.msra.mxu0 %v839
        %880 = vmatprep.subr.bf16.mxu0 0
        %881 = vmatpush2.bf16.xpose.msra.mxu0 0
        %882 = vmatprep.subr.bf16.mxu0 0
        %883 = vmatpush2.bf16.xpose.msra.mxu0 0
        %884 = vmatprep.subr.bf16.mxu0 0
        %885 = vmatpush2.bf16.xpose.msra.mxu0 0
        %886 = vmatprep.subr.bf16.mxu0 0
        %887 = vmatpush2.bf16.xpose.msra.mxu0 0
        %888 = vmatprep.subr.bf16.mxu0 0
        %889 = vmatpush2.bf16.xpose.msra.mxu0 0
        %890 = vmatprep.subr.bf16.mxu0 0
        %891 = vmatpush2.bf16.xpose.msra.mxu0 0
        %892 = vmatprep.subr.bf16.mxu0 0
        %893 = vmatpush2.bf16.xpose.msra.mxu0 0
        %894 = vmatprep.subr.bf16.mxu0 0
        %895 = vmatpush2.bf16.xpose.msra.mxu0 0
        %896 = vmatprep.mubr.bf16.mxu0 0
        %897 = vmatmul.mubr.bf16.gmra.mxu0 %v607
        %v898 = vpop.f32.mrf.mxu0
        %v899 = vadd.f32 %v863, %v898
        %v900 = vpop.f32.mrf.mxu0
        %v901 = vpop.f32.mrf.mxu0
        %v902 = vpop.f32.mrf.mxu0
        %903 = vdwg.mxu0
        %vm904 = vcmask 523264
        %v905 = vsel %vm904, %v899, -inf
        %906 = vmax.xlane.f32.xlu0 %v905
        %v907 = vpop.xlane.xlu0 %906
        %v908 = vsub.f32 %v899, %v907
        %v909 = vmul.f32 %v908, 1.442695
        %v910 = vpow.pop %v909
        %v911 = vpack.c.bf16 %v910, %v910
        %v912 = vld [vmem:[%s10] sm:$0xf]
        %v913 = vld [vmem:[%s10 + $0x4] sm:$0xf]
        %v914 = vld [vmem:[%s10 + $0x8] sm:$0xf]
        %v915 = vld [vmem:[%s10 + $0xc] sm:$0xf]
        %v916 = vld [vmem:[%s10 + $0x10] sm:$0xf]
        %v917 = vld [vmem:[%s10 + $0x14] sm:$0xf]
        %v918 = vld [vmem:[%s10 + $0x18] sm:$0xf]
        %v919 = vld [vmem:[%s10 + $0x1c] sm:$0xf]
        %v928 = vunpack.c.l.b16 %v912
        %v929 = vunpack.c.l.b16 %v913
        %v930 = vunpack.c.l.b16 %v914
        %v931 = vunpack.c.l.b16 %v915
        %v932 = vunpack.c.l.b16 %v916
        %v933 = vunpack.c.l.b16 %v917
        %v934 = vunpack.c.l.b16 %v918
        %v935 = vunpack.c.l.b16 %v919
        %v936 = vpack.c.b16 %v929, %v928
        %v937 = vpack.c.b16 %v931, %v930
        %v938 = vpack.c.b16 %v933, %v932
        %v939 = vpack.c.b16 %v935, %v934
        %v945 = vsel %vm904, %v911, 0
        %947 = vmatprep.subr.bf16.mxu0 0
        %948 = vmatpush1.bf16.msra.mxu0 0
        %949 = vmatprep.subr.bf16.mxu0 0
        %950 = vmatpush1.bf16.msra.mxu0 0
        %951 = vmatprep.subr.bf16.mxu0 0
        %952 = vmatpush1.bf16.msra.mxu0 0
        %953 = vmatprep.subr.bf16.mxu0 0
        %954 = vmatpush1.bf16.msra.mxu0 0
        %955 = vmatprep.subr.bf16.mxu0 0
        %956 = vmatpush1.bf16.msra.mxu0 %v939
        %957 = vmatprep.subr.bf16.mxu0 0
        %958 = vmatpush1.bf16.msra.mxu0 %v938
        %959 = vmatprep.subr.bf16.mxu0 0
        %960 = vmatpush1.bf16.msra.mxu0 %v937
        %961 = vmatprep.subr.bf16.mxu0 0
        %962 = vmatpush1.bf16.msra.mxu0 %v936
        %963 = vmatprep.subr.bf16.mxu0 0
        %964 = vmatpush2.bf16.msra.mxu0 0
        %965 = vmatprep.subr.bf16.mxu0 0
        %966 = vmatpush2.bf16.msra.mxu0 0
        %967 = vmatprep.subr.bf16.mxu0 0
        %968 = vmatpush2.bf16.msra.mxu0 0
        %969 = vmatprep.subr.bf16.mxu0 0
        %970 = vmatpush2.bf16.msra.mxu0 0
        %971 = vmatprep.subr.bf16.mxu0 0
        %972 = vmatpush2.bf16.msra.mxu0 0
        %973 = vmatprep.subr.bf16.mxu0 0
        %974 = vmatpush2.bf16.msra.mxu0 0
        %975 = vmatprep.subr.bf16.mxu0 0
        %976 = vmatpush2.bf16.msra.mxu0 0
        %977 = vmatprep.subr.bf16.mxu0 0
        %978 = vmatpush2.bf16.msra.mxu0 0
        %979 = vmatprep.mubr.bf16.mxu0 0
        %980 = vmatmul.mubr.bf16.gmra.mxu0 %v945
        %v981 = vpop.f32.mrf.mxu0
        %v982 = vadd.f32 0.0, %v981
        %v983 = vpop.f32.mrf.mxu0
        %v984 = vpop.f32.mrf.mxu0
        %v985 = vpop.f32.mrf.mxu0
        %986 = vdwg.mxu0
        %v987 = vrcp.pop %v982
        %v988 = vpack.c.bf16 %v987, %v987
        %v989 = vld [vmem:[%s11] sm:$0xf]
        %v991 = vsel %vm741, %v988, 0
        %v994 = vsel %vm754, %v989, 0
        %996 = vmatprep.subr.bf16.mxu0 0
        %997 = vmatpush1.bf16.msra.mxu0 0
        %998 = vmatprep.subr.bf16.mxu0 0
        %999 = vmatpush1.bf16.msra.mxu0 0
        %1000 = vmatprep.subr.bf16.mxu0 0
        %1001 = vmatpush1.bf16.msra.mxu0 0
        %1002 = vmatprep.subr.bf16.mxu0 0
        %1003 = vmatpush1.bf16.msra.mxu0 0
        %1004 = vmatprep.subr.bf16.mxu0 0
        %1005 = vmatpush1.bf16.msra.mxu0 0
        %1006 = vmatprep.subr.bf16.mxu0 0
        %1007 = vmatpush1.bf16.msra.mxu0 0
        %1008 = vmatprep.subr.bf16.mxu0 0
        %1009 = vmatpush1.bf16.msra.mxu0 0
        %1010 = vmatprep.subr.bf16.mxu0 0
        %1011 = vmatpush1.bf16.msra.mxu0 %v994
        %1012 = vmatprep.subr.bf16.mxu0 0
        %1013 = vmatpush2.bf16.msra.mxu0 0
        %1014 = vmatprep.subr.bf16.mxu0 0
        %1015 = vmatpush2.bf16.msra.mxu0 0
        %1016 = vmatprep.subr.bf16.mxu0 0
        %1017 = vmatpush2.bf16.msra.mxu0 0
        %1018 = vmatprep.subr.bf16.mxu0 0
        %1019 = vmatpush2.bf16.msra.mxu0 0
        %1020 = vmatprep.subr.bf16.mxu0 0
        %1021 = vmatpush2.bf16.msra.mxu0 0
        %1022 = vmatprep.subr.bf16.mxu0 0
        %1023 = vmatpush2.bf16.msra.mxu0 0
        %1024 = vmatprep.subr.bf16.mxu0 0
        %1025 = vmatpush2.bf16.msra.mxu0 0
        %1026 = vmatprep.subr.bf16.mxu0 0
        %1027 = vmatpush2.bf16.msra.mxu0 0
        %1028 = vmatprep.mubr.bf16.mxu0 0
        %1029 = vmatmul.mubr.bf16.gmra.mxu0 %v991
        %v1030 = vpop.f32.mrf.mxu0
        %v1031 = vadd.f32 0.0, %v1030
        %v1032 = vpop.f32.mrf.mxu0
        %v1033 = vpop.f32.mrf.mxu0
        %v1034 = vpop.f32.mrf.mxu0
        %1035 = vdwg.mxu0
        %1036 = vmatprep.subr.bf16.mxu0 0
        %1037 = vmatpush1.bf16.msra.mxu0 0
        %1038 = vmatprep.subr.bf16.mxu0 0
        %1039 = vmatpush1.bf16.msra.mxu0 0
        %1040 = vmatprep.subr.bf16.mxu0 0
        %1041 = vmatpush1.bf16.msra.mxu0 0
        %1042 = vmatprep.subr.bf16.mxu0 0
        %1043 = vmatpush1.bf16.msra.mxu0 0
        %1044 = vmatprep.subr.bf16.mxu0 0
        %1045 = vmatpush1.bf16.msra.mxu0 %v862
        %1046 = vmatprep.subr.bf16.mxu0 0
        %1047 = vmatpush1.bf16.msra.mxu0 %v861
        %1048 = vmatprep.subr.bf16.mxu0 0
        %1049 = vmatpush1.bf16.msra.mxu0 %v860
        %1050 = vmatprep.subr.bf16.mxu0 0
        %1051 = vmatpush1.bf16.msra.mxu0 %v859
        %1052 = vmatprep.subr.bf16.mxu0 0
        %1053 = vmatpush2.bf16.msra.mxu0 0
        %1054 = vmatprep.subr.bf16.mxu0 0
        %1055 = vmatpush2.bf16.msra.mxu0 0
        %1056 = vmatprep.subr.bf16.mxu0 0
        %1057 = vmatpush2.bf16.msra.mxu0 0
        %1058 = vmatprep.subr.bf16.mxu0 0
        %1059 = vmatpush2.bf16.msra.mxu0 0
        %1060 = vmatprep.subr.bf16.mxu0 0
        %1061 = vmatpush2.bf16.msra.mxu0 0
        %1062 = vmatprep.subr.bf16.mxu0 0
        %1063 = vmatpush2.bf16.msra.mxu0 0
        %1064 = vmatprep.subr.bf16.mxu0 0
        %1065 = vmatpush2.bf16.msra.mxu0 0
        %1066 = vmatprep.subr.bf16.mxu0 0
        %1067 = vmatpush2.bf16.msra.mxu0 0
        %1068 = vmatprep.mubr.bf16.mxu0 0
        %1069 = vmatmul.mubr.bf16.gmra.mxu0 %v945
        %v1070 = vpop.f32.mrf.mxu0
        %v1071 = vadd.f32 0.0, %v1070
        %v1072 = vpop.f32.mrf.mxu0
        %v1073 = vpop.f32.mrf.mxu0
        %v1074 = vpop.f32.mrf.mxu0
        %1075 = vdwg.mxu0
        %v1076 = vmul.f32 %v1071, %v1031
        %v1077 = vpack.c.bf16 %v1076, %v1076
        %v1078 = vld [vmem:[%s12] sm:$0xf]
        %v1079 = vld [vmem:[%s12 + $0x4] sm:$0xf]
        %v1080 = vld [vmem:[%s12 + $0x8] sm:$0xf]
        %v1081 = vld [vmem:[%s12 + $0xc] sm:$0xf]
        %v1082 = vld [vmem:[%s12 + $0x10] sm:$0xf]
        %v1083 = vld [vmem:[%s12 + $0x14] sm:$0xf]
        %v1084 = vld [vmem:[%s12 + $0x18] sm:$0xf]
        %v1085 = vld [vmem:[%s12 + $0x1c] sm:$0xf]
        %v1086 = vld [vmem:[%s12 + $0x20] sm:$0xf]
        %v1087 = vld [vmem:[%s12 + $0x24] sm:$0xf]
        %v1088 = vld [vmem:[%s12 + $0x28] sm:$0xf]
        %v1089 = vld [vmem:[%s12 + $0x2c] sm:$0xf]
        %v1090 = vld [vmem:[%s12 + $0x30] sm:$0xf]
        %v1091 = vld [vmem:[%s12 + $0x34] sm:$0xf]
        %v1092 = vld [vmem:[%s12 + $0x38] sm:$0xf]
        %v1093 = vld [vmem:[%s12 + $0x3c] sm:$0xf]
        %v1110 = vunpack.c.l.b16 %v1078
        %v1111 = vunpack.c.l.b16 %v1079
        %v1112 = vunpack.c.l.b16 %v1080
        %v1113 = vunpack.c.l.b16 %v1081
        %v1114 = vunpack.c.l.b16 %v1082
        %v1115 = vunpack.c.l.b16 %v1083
        %v1116 = vunpack.c.l.b16 %v1084
        %v1117 = vunpack.c.l.b16 %v1085
        %v1118 = vunpack.c.l.b16 %v1086
        %v1119 = vunpack.c.l.b16 %v1087
        %v1120 = vunpack.c.l.b16 %v1088
        %v1121 = vunpack.c.l.b16 %v1089
        %v1122 = vunpack.c.l.b16 %v1090
        %v1123 = vunpack.c.l.b16 %v1091
        %v1124 = vunpack.c.l.b16 %v1092
        %v1125 = vunpack.c.l.b16 %v1093
        %v1126 = vpack.c.b16 %v1111, %v1110
        %v1127 = vpack.c.b16 %v1113, %v1112
        %v1128 = vpack.c.b16 %v1115, %v1114
        %v1129 = vpack.c.b16 %v1117, %v1116
        %v1130 = vpack.c.b16 %v1119, %v1118
        %v1131 = vpack.c.b16 %v1121, %v1120
        %v1132 = vpack.c.b16 %v1123, %v1122
        %v1133 = vpack.c.b16 %v1125, %v1124
        %1142 = vmatprep.subr.bf16.mxu0 0
        %1143 = vmatpush1.bf16.msra.mxu0 %v1133
        %1144 = vmatprep.subr.bf16.mxu0 0
        %1145 = vmatpush1.bf16.msra.mxu0 %v1132
        %1146 = vmatprep.subr.bf16.mxu0 0
        %1147 = vmatpush1.bf16.msra.mxu0 %v1131
        %1148 = vmatprep.subr.bf16.mxu0 0
        %1149 = vmatpush1.bf16.msra.mxu0 %v1130
        %1150 = vmatprep.subr.bf16.mxu0 0
        %1151 = vmatpush1.bf16.msra.mxu0 %v1129
        %1152 = vmatprep.subr.bf16.mxu0 0
        %1153 = vmatpush1.bf16.msra.mxu0 %v1128
        %1154 = vmatprep.subr.bf16.mxu0 0
        %1155 = vmatpush1.bf16.msra.mxu0 %v1127
        %1156 = vmatprep.subr.bf16.mxu0 0
        %1157 = vmatpush1.bf16.msra.mxu0 %v1126
        %1158 = vmatprep.subr.bf16.mxu0 0
        %1159 = vmatpush2.bf16.msra.mxu0 0
        %1160 = vmatprep.subr.bf16.mxu0 0
        %1161 = vmatpush2.bf16.msra.mxu0 0
        %1162 = vmatprep.subr.bf16.mxu0 0
        %1163 = vmatpush2.bf16.msra.mxu0 0
        %1164 = vmatprep.subr.bf16.mxu0 0
        %1165 = vmatpush2.bf16.msra.mxu0 0
        %1166 = vmatprep.subr.bf16.mxu0 0
        %1167 = vmatpush2.bf16.msra.mxu0 0
        %1168 = vmatprep.subr.bf16.mxu0 0
        %1169 = vmatpush2.bf16.msra.mxu0 0
        %1170 = vmatprep.subr.bf16.mxu0 0
        %1171 = vmatpush2.bf16.msra.mxu0 0
        %1172 = vmatprep.subr.bf16.mxu0 0
        %1173 = vmatpush2.bf16.msra.mxu0 0
        %1174 = vmatprep.mubr.bf16.mxu0 0
        %1175 = vmatmul.mubr.bf16.gmra.mxu0 %v1077
        %v1176 = vpop.f32.mrf.mxu0
        %v1177 = vadd.f32 0.0, %v1176
        %v1178 = vpop.f32.mrf.mxu0
        %v1179 = vpop.f32.mrf.mxu0
        %v1180 = vpop.f32.mrf.mxu0
        %1181 = vdwg.mxu0
        %v1182 = vmul.f32 %v1177, %v1177
        %v1183 = vsel %vm521, %v1182, 0.0
        %1184 = vadd.xlane.f32.xlu0 %v1183
        %v1185 = vpop.xlane.xlu0 %1184
        %v1186 = vmul.f32 %v1185, %v525
        %v1187 = vadd.f32 %v1186, 1e-06
        %v1188 = vrsqrt.pop %v1187
        %v1189 = vmul.f32 %v1177, %v1188
        %v1190 = vlaneseq
        %v1191 = vshrl.u32 %v1190, 7
        %v1192 = vsub.s32 1, %v1191
        %v1193 = vrot.slane %v519, %v1192
        %v1194 = vmul.f32 %v1189, %v1193
        %v1195 = vadd.f32 %v518, %v1194
        %v1196 = vmul.f32 %v1195, %v1195
        %v1197 = vsel %vm521, %v1196, 0.0
        %1198 = vadd.xlane.f32.xlu0 %v1197
        %v1199 = vpop.xlane.xlu0 %1198
        %v1200 = vmul.f32 %v1199, %v525
        %v1201 = vadd.f32 %v1200, 1e-06
        %v1202 = vrsqrt.pop %v1201
        %v1203 = vmul.f32 %v1195, %v1202
        %v1204 = vlaneseq
        %v1205 = vshrl.u32 %v1204, 7
        %v1206 = vsub.s32 2, %v1205
        %v1207 = vrot.slane %v519, %v1206
        %v1208 = vmul.f32 %v1203, %v1207
        %v1209 = vpack.c.bf16 %v1208, %v1208
        %v1210 = vld [vmem:[%s13] sm:$0xf]
        %v1211 = vld [vmem:[%s13 + $0x4] sm:$0xf]
        %v1212 = vld [vmem:[%s13 + $0x8] sm:$0xf]
        %v1213 = vld [vmem:[%s13 + $0xc] sm:$0xf]
        %v1218 = vunpack.c.l.b16 %v1210
        %v1219 = vunpack.c.l.b16 %v1211
        %v1220 = vunpack.c.l.b16 %v1212
        %v1221 = vunpack.c.l.b16 %v1213
        %v1222 = vpack.c.b16 %v1219, %v1218
        %v1223 = vpack.c.b16 %v1221, %v1220
        %v1227 = vsel %vm521, %v1209, 0
        %1229 = vmatprep.subr.bf16.mxu0 0
        %1230 = vmatpush1.bf16.msra.mxu0 0
        %1231 = vmatprep.subr.bf16.mxu0 0
        %1232 = vmatpush1.bf16.msra.mxu0 0
        %1233 = vmatprep.subr.bf16.mxu0 0
        %1234 = vmatpush1.bf16.msra.mxu0 0
        %1235 = vmatprep.subr.bf16.mxu0 0
        %1236 = vmatpush1.bf16.msra.mxu0 0
        %1237 = vmatprep.subr.bf16.mxu0 0
        %1238 = vmatpush1.bf16.msra.mxu0 0
        %1239 = vmatprep.subr.bf16.mxu0 0
        %1240 = vmatpush1.bf16.msra.mxu0 0
        %1241 = vmatprep.subr.bf16.mxu0 0
        %1242 = vmatpush1.bf16.msra.mxu0 %v1223
        %1243 = vmatprep.subr.bf16.mxu0 0
        %1244 = vmatpush1.bf16.msra.mxu0 %v1222
        %1245 = vmatprep.subr.bf16.mxu0 0
        %1246 = vmatpush2.bf16.msra.mxu0 0
        %1247 = vmatprep.subr.bf16.mxu0 0
        %1248 = vmatpush2.bf16.msra.mxu0 0
        %1249 = vmatprep.subr.bf16.mxu0 0
        %1250 = vmatpush2.bf16.msra.mxu0 0
        %1251 = vmatprep.subr.bf16.mxu0 0
        %1252 = vmatpush2.bf16.msra.mxu0 0
        %1253 = vmatprep.subr.bf16.mxu0 0
        %1254 = vmatpush2.bf16.msra.mxu0 0
        %1255 = vmatprep.subr.bf16.mxu0 0
        %1256 = vmatpush2.bf16.msra.mxu0 0
        %1257 = vmatprep.subr.bf16.mxu0 0
        %1258 = vmatpush2.bf16.msra.mxu0 0
        %1259 = vmatprep.subr.bf16.mxu0 0
        %1260 = vmatpush2.bf16.msra.mxu0 0
        %1261 = vmatprep.mubr.bf16.mxu0 0
        %1262 = vmatmul.mubr.bf16.gmra.mxu0 %v1227
        %v1263 = vpop.f32.mrf.mxu0
        %v1264 = vadd.f32 0.0, %v1263
        %v1265 = vpop.f32.mrf.mxu0
        %v1266 = vpop.f32.mrf.mxu0
        %v1267 = vpop.f32.mrf.mxu0
        %1268 = vdwg.mxu0
        %v1269 = vsub.f32 0.0, %v1264
        %v1270 = vmul.f32 %v1269, 1.442695
        %v1271 = vpow.pop %v1270
        %v1272 = vadd.f32 %v1271, 1.0
        %v1273 = vrcp.pop %v1272
        %v1274 = vmul.f32 %v1264, %v1273
        %1275 = vrot.lane.b32.xlu0 %v1264, 64
        %v1276 = vpop.permute.xlu0 %1275
        %v1277 = vmul.f32 %v1274, %v1276
        %v1278 = vpack.c.bf16 %v1277, %v1277
        %v1279 = vld [vmem:[%s14] sm:$0xf]
        %v1280 = vld [vmem:[%s14 + $0x4] sm:$0xf]
        %v1281 = vld [vmem:[%s14 + $0x8] sm:$0xf]
        %v1282 = vld [vmem:[%s14 + $0xc] sm:$0xf]
        %v1283 = vld [vmem:[%s14 + $0x10] sm:$0xf]
        %v1284 = vld [vmem:[%s14 + $0x14] sm:$0xf]
        %v1285 = vld [vmem:[%s14 + $0x18] sm:$0xf]
        %v1286 = vld [vmem:[%s14 + $0x1c] sm:$0xf]
        %v1287 = vld [vmem:[%s14 + $0x20] sm:$0xf]
        %v1288 = vld [vmem:[%s14 + $0x24] sm:$0xf]
        %v1289 = vld [vmem:[%s14 + $0x28] sm:$0xf]
        %v1290 = vld [vmem:[%s14 + $0x2c] sm:$0xf]
        %v1291 = vld [vmem:[%s14 + $0x30] sm:$0xf]
        %v1292 = vld [vmem:[%s14 + $0x34] sm:$0xf]
        %v1293 = vld [vmem:[%s14 + $0x38] sm:$0xf]
        %v1294 = vld [vmem:[%s14 + $0x3c] sm:$0xf]
        %v1311 = vunpack.c.l.b16 %v1279
        %v1312 = vunpack.c.l.b16 %v1280
        %v1313 = vunpack.c.l.b16 %v1281
        %v1314 = vunpack.c.l.b16 %v1282
        %v1315 = vunpack.c.l.b16 %v1283
        %v1316 = vunpack.c.l.b16 %v1284
        %v1317 = vunpack.c.l.b16 %v1285
        %v1318 = vunpack.c.l.b16 %v1286
        %v1319 = vunpack.c.l.b16 %v1287
        %v1320 = vunpack.c.l.b16 %v1288
        %v1321 = vunpack.c.l.b16 %v1289
        %v1322 = vunpack.c.l.b16 %v1290
        %v1323 = vunpack.c.l.b16 %v1291
        %v1324 = vunpack.c.l.b16 %v1292
        %v1325 = vunpack.c.l.b16 %v1293
        %v1326 = vunpack.c.l.b16 %v1294
        %v1327 = vpack.c.b16 %v1312, %v1311
        %v1328 = vpack.c.b16 %v1314, %v1313
        %v1329 = vpack.c.b16 %v1316, %v1315
        %v1330 = vpack.c.b16 %v1318, %v1317
        %v1331 = vpack.c.b16 %v1320, %v1319
        %v1332 = vpack.c.b16 %v1322, %v1321
        %v1333 = vpack.c.b16 %v1324, %v1323
        %v1334 = vpack.c.b16 %v1326, %v1325
        %1343 = vmatprep.subr.bf16.mxu0 0
        %1344 = vmatpush1.bf16.msra.mxu0 %v1334
        %1345 = vmatprep.subr.bf16.mxu0 0
        %1346 = vmatpush1.bf16.msra.mxu0 %v1333
        %1347 = vmatprep.subr.bf16.mxu0 0
        %1348 = vmatpush1.bf16.msra.mxu0 %v1332
        %1349 = vmatprep.subr.bf16.mxu0 0
        %1350 = vmatpush1.bf16.msra.mxu0 %v1331
        %1351 = vmatprep.subr.bf16.mxu0 0
        %1352 = vmatpush1.bf16.msra.mxu0 %v1330
        %1353 = vmatprep.subr.bf16.mxu0 0
        %1354 = vmatpush1.bf16.msra.mxu0 %v1329
        %1355 = vmatprep.subr.bf16.mxu0 0
        %1356 = vmatpush1.bf16.msra.mxu0 %v1328
        %1357 = vmatprep.subr.bf16.mxu0 0
        %1358 = vmatpush1.bf16.msra.mxu0 %v1327
        %1359 = vmatprep.subr.bf16.mxu0 0
        %1360 = vmatpush2.bf16.msra.mxu0 0
        %1361 = vmatprep.subr.bf16.mxu0 0
        %1362 = vmatpush2.bf16.msra.mxu0 0
        %1363 = vmatprep.subr.bf16.mxu0 0
        %1364 = vmatpush2.bf16.msra.mxu0 0
        %1365 = vmatprep.subr.bf16.mxu0 0
        %1366 = vmatpush2.bf16.msra.mxu0 0
        %1367 = vmatprep.subr.bf16.mxu0 0
        %1368 = vmatpush2.bf16.msra.mxu0 0
        %1369 = vmatprep.subr.bf16.mxu0 0
        %1370 = vmatpush2.bf16.msra.mxu0 0
        %1371 = vmatprep.subr.bf16.mxu0 0
        %1372 = vmatpush2.bf16.msra.mxu0 0
        %1373 = vmatprep.subr.bf16.mxu0 0
        %1374 = vmatpush2.bf16.msra.mxu0 0
        %1375 = vmatprep.mubr.bf16.mxu0 0
        %1376 = vmatmul.mubr.bf16.gmra.mxu0 %v1278
        %v1377 = vpop.f32.mrf.mxu0
        %v1378 = vadd.f32 0.0, %v1377
        %v1379 = vpop.f32.mrf.mxu0
        %v1380 = vpop.f32.mrf.mxu0
        %v1381 = vpop.f32.mrf.mxu0
        %1382 = vdwg.mxu0
        %v1383 = vmul.f32 %v1378, %v1378
        %v1384 = vsel %vm521, %v1383, 0.0
        %1385 = vadd.xlane.f32.xlu0 %v1384
        %v1386 = vpop.xlane.xlu0 %1385
        %v1387 = vmul.f32 %v1386, %v525
        %v1388 = vadd.f32 %v1387, 1e-06
        %v1389 = vrsqrt.pop %v1388
        %v1390 = vmul.f32 %v1378, %v1389
        %v1391 = vlaneseq
        %v1392 = vshrl.u32 %v1391, 7
        %v1393 = vsub.s32 3, %v1392
        %v1394 = vrot.slane %v519, %v1393
        %v1395 = vmul.f32 %v1390, %v1394
        %v1396 = vadd.f32 %v1195, %v1395
        %1397 = vst.msk [vmem:[%s512] sm:$0xff] %vm521, %v1396
        %s1398 = sand.u32 %s379, 1
        %s1399 = scalar_lea.sflag [#allocation3], %s1398
        %s1400 = sand.u32 %s379, 1
        %s1401 = smul.addr %s1400, 8
        %s1402 = scalar_lea.vmem [#allocation2], %s1401
        // Predicated region
        $region85: #{decoder_layer.1} parent=83 // pred_check
          %p1403 = pneg %p389
        $region86: #{decoder_layer.1} parent=83 // pred_check_branch
          %1405 = sbr.rel (%p1403) target = $region88
        $region87: #{decoder_layer.1} parent=83 // pred_region
          %s1407 = ssub.s32 128, 128
          %1408 = vsyncadd %s1399, %s1407
          %s1409 = smul.addr %s30, 128
          %s1410 = scalar_lea.hbm %s16, %s1409
          %s1412 = sshll.u32 %s1402, 4
          %s1413 = int_to_ptr.vmem [resolvable:$true] %s1412
          %1415 = dma.vmem_to_hbm [thread:$0]  %s1413, 128, %s1410, %s1399
        $region88: #{decoder_layer.1} parent=83 // pred_fallthru
          _
      $region84: #{decoder_layer.1} parent=5 // pred_fallthru
        _
      %p1416 = scmp.le.s32.totalorder 2, %s25
      // Predicated region
      $region89: #{decoder_layer.1} parent=5 // pred_check
        %p1417 = pneg %p1416
      $region90: #{decoder_layer.1} parent=5 // pred_check_branch
        %1419 = sbr.rel (%p1417) target = $region92
      $region91: #{decoder_layer.1} parent=5 // pred_region
        %s1420 = ssub.s32 %s25, 2
        // Predicated region
        $region93: #{decoder_layer.1} parent=91 // pred_check
          %p1421 = pneg %p395
        $region94: #{decoder_layer.1} parent=91 // pred_check_branch
          %1423 = sbr.rel (%p1421) target = $region96
        $region95: #{decoder_layer.1} parent=91 // pred_region
          %s1424 = sand.u32 %s380, 1
          %s1425 = scalar_lea.sflag [#allocation3], %s1424
          %s1426 = sand.u32 %s380, 1
          %s1427 = smul.addr %s1426, 8
          %s1428 = scalar_lea.vmem [#allocation2], %s1427
          %1429 = dma.done %s1425, 128
        $region96: #{decoder_layer.1} parent=91 // pred_fallthru
          _
      $region92: #{decoder_layer.1} parent=5 // pred_fallthru
        _
    $region6: #{decoder_layer.1} parent=1 // loop_footer
      %s29 = sadd.s32 1, %s25
    $region7: #{decoder_layer.1} parent=1 // loop_footer_branch
      %24 = sbr.rel target = $region3
    $region8: #{decoder_layer.1} parent=1 // loop_exit
      _
    %1430 = vsyncpa [#allocation3], 1
    %s1431 = scalar_lea.sflag [#allocation3], 1
    %1432 = vsyncpa %s1431, 1

</llo_original>
